<compile_context>
chip_gen: v7x
topology: tpu7x:2x2x1
jax: 0.10.0
libtpu: 0.0.40
codegen_flags: <defaults>
</compile_context>

<pallas_src>
import functools

import numpy as np

import jax
import jax.numpy as jnp
from jax.experimental import pallas as pl
from jax.experimental.pallas import tpu as pltpu


# ---------------------------------------------------------------------------
# Static tile schedule: upper-triangular tiles, load-balanced over shards.
# ---------------------------------------------------------------------------
def _build_schedule(ni, num_shards):
    """Returns flat int32 tables (i, j, active) of shape (num_shards*max_steps,)."""
    # Greedy LPT row assignment: row tile i has (ni - i) active column tiles.
    rows = [[] for _ in range(num_shards)]
    loads = [0] * num_shards
    for i in range(ni):
        t = min(range(num_shards), key=lambda k: loads[k])
        rows[t].append(i)
        loads[t] += ni - i

    tiles = []
    for t in range(num_shards):
        lst = []
        for i in rows[t]:
            for j in range(i, ni):          # each row sweep starts at its diag tile
                lst.append((i, j))
        tiles.append(lst)

    max_steps = max(1, max(len(t) for t in tiles))
    i_tbl = np.zeros((num_shards, max_steps), np.int32)
    j_tbl = np.zeros((num_shards, max_steps), np.int32)
    a_tbl = np.zeros((num_shards, max_steps), np.int32)
    for t in range(num_shards):
        lst = tiles[t]
        for s, (i, j) in enumerate(lst):
            i_tbl[t, s], j_tbl[t, s], a_tbl[t, s] = i, j, 1
        li, lj = lst[-1]                    # shards are never empty (num_shards <= ni)
        for s in range(len(lst), max_steps):
            # Inactive padding steps revisit this shard's last real tile: the
            # resident output block is untouched and written back unchanged.
            i_tbl[t, s], j_tbl[t, s], a_tbl[t, s] = li, lj, 0
    return i_tbl.reshape(-1), j_tbl.reshape(-1), a_tbl.reshape(-1), max_steps


# ---------------------------------------------------------------------------
# Kernel factory.
# ---------------------------------------------------------------------------
def _make_kernel(*, tile, ni, n, max_steps, target_dist):
    has_pad = (ni * tile != n)
    last_valid = n - (ni - 1) * tile        # valid rows/cols inside the last tile
    last = ni - 1
    a_const = 0.5 - float(target_dist)      # ham - target = a_const - 0.5 * <n_i, n_j>

    def kernel(i_tbl, j_tbl, a_tbl, xr_ref, xc_ref, lr_ref, lc_ref, o_ref):
        c = pl.program_id(0)                # shard (megacore-parallel on v7x)
        s = pl.program_id(1)                # step within the shard (reduction-ish)
        step = c * max_steps + s
        ti = i_tbl[step]
        tj = j_tbl[step]
        act = a_tbl[step] == 1

        # Shared per-tile compute (embeddings are pre-normalized in the wrapper).
        xr = xr_ref[...]                                   # (tile, D) f32
        xc = xc_ref[...]                                   # (tile, D) f32
        dotp = jax.lax.dot_general(xr, xc, (((1,), (1,)), ((), ())),
                                   preferred_element_type=jnp.float32)
        h = 0.5 * dotp
        ham = 0.5 - h                                      # 0.5 * (1 - dot)
        nd = a_const - h                                   # ham - target_dist
        ndsq = nd * nd
        same = lr_ref[...] == lc_ref[...]                  # (tile, tile) bool

        def accumulate(pos_mask, neg_mask, init):
            posf = pos_mask.astype(jnp.float32)
            negf = (1.0 - posf) if neg_mask is None else neg_mask.astype(jnp.float32)
            pos_row = jnp.sum(ham * posf, axis=0, keepdims=True)    # (1, tile)
            neg_row = jnp.sum(ndsq * negf, axis=0, keepdims=True)   # (1, tile)
            upd = jnp.concatenate([pos_row, neg_row], axis=0)       # (2, tile)
            if init:          # first (diagonal) tile of the row sweep: overwrite
                o_ref[...] = upd
            else:             # subsequent tiles: accumulate into the resident block
                o_ref[...] += upd

        def tri_iotas():
            r = jax.lax.broadcasted_iota(jnp.int32, (tile, tile), 0)
            col = jax.lax.broadcasted_iota(jnp.int32, (tile, tile), 1)
            return r, col

        diag = act & (ti == tj)
        off = act & (ti != tj)

        if has_pad:
            @pl.when(diag & (ti != last))          # diagonal tile, no padding
            def _():
                r, col = tri_iotas()
                upper = col > r
                accumulate(upper & same, upper & (~same), init=True)

            @pl.when(diag & (ti == last))          # the single padded diagonal tile
            def _():
                r, col = tri_iotas()
                m = (col > r) & (r < last_valid) & (col < last_valid)
                accumulate(m & same, m & (~same), init=True)

            @pl.when(off & (tj != last))           # interior off-diag: all pairs valid
            def _():
                accumulate(same, None, init=False)

            @pl.when(off & (tj == last))           # off-diag tile in padded last column
            def _():
                _, col = tri_iotas()
                cv = col < last_valid
                accumulate(cv & same, cv & (~same), init=False)
        else:
            @pl.when(diag)
            def _():
                r, col = tri_iotas()
                upper = col > r
                accumulate(upper & same, upper & (~same), init=True)

            @pl.when(off)
            def _():
                accumulate(same, None, init=False)

    return kernel


# ---------------------------------------------------------------------------
# Wrapper.
# ---------------------------------------------------------------------------
@functools.partial(jax.jit, static_argnames=("lambda_neg", "target_dist", "tile"))
def hamming_refinement_loss(refined_embeddings, labels, *,
                            lambda_neg=1.0, target_dist=0.5, tile=256):
    """Returns (total_loss, loss_pos, loss_neg), matching the PyTorch module."""
    n, d = refined_embeddings.shape
    tile = int(tile)
    assert tile % 128 == 0, "tile must be a multiple of 128 (lane width)"
    ni = (n + tile - 1) // tile
    npad = ni * tile

    # Hoisted L2 normalization (F.normalize p=2 dim=1, eps=1e-12): O(N*D) once.
    emb = refined_embeddings.astype(jnp.float32)
    norm = jnp.sqrt(jnp.sum(emb * emb, axis=1, keepdims=True))
    nemb = emb / jnp.maximum(norm, jnp.float32(1e-12))

    lab = labels.astype(jnp.int32)
    if npad != n:
        nemb = jnp.pad(nemb, ((0, npad - n), (0, 0)))          # zero rows -> masked
        lab_p = jnp.pad(lab, (0, npad - n), constant_values=-1)
    else:
        lab_p = lab
    lab_row = lab_p.reshape(npad, 1)
    lab_col = lab_p.reshape(1, npad)

    # Compressed upper-triangular tile schedule, 2 balanced shards for megacore.
    num_shards = 2 if ni >= 2 else 1
    i_np, j_np, a_np, max_steps = _build_schedule(ni, num_shards)

    kernel = _make_kernel(tile=tile, ni=ni, n=n, max_steps=max_steps,
                          target_dist=float(target_dist))

    def _step(c, s):
        return c * max_steps + s

    row_map = lambda c, s, it, jt, at: (it[_step(c, s)], 0)
    col_map = lambda c, s, it, jt, at: (jt[_step(c, s)], 0)
    lrow_map = lambda c, s, it, jt, at: (it[_step(c, s)], 0)
    lcol_map = lambda c, s, it, jt, at: (0, jt[_step(c, s)])
    out_map = lambda c, s, it, jt, at: (it[_step(c, s)], 0, 0)

    n_active = ni * (ni + 1) // 2
    cost = pl.CostEstimate(
        flops=int(2 * n_active * tile * tile * d + 12 * n_active * tile * tile),
        transcendentals=0,
        bytes_accessed=int(4 * (n_active * 2 * tile * d
                                + n_active * 2 * tile + ni * 2 * tile)),
    )

    # VMEM budget: row+col embedding tiles (double-buffered) dominate; keep the
    # limit explicit but capped at v7x's 64 MiB physical VMEM.
    vmem_need = (2 * 2 * tile * d * 4          # 2 emb tiles x 2 buffers
                 + 2 * 2 * 2 * tile * 4        # label tiles
                 + 2 * 2 * tile * 4)           # output partial block
    vmem_limit = int(min(64 * 1024 * 1024,
                         max(32 * 1024 * 1024, 2 * vmem_need + (4 << 20))))

    partials = pl.pallas_call(
        kernel,
        out_shape=jax.ShapeDtypeStruct((ni, 2, tile), jnp.float32),
        grid_spec=pltpu.PrefetchScalarGridSpec(
            num_scalar_prefetch=3,
            grid=(num_shards, max_steps),
            in_specs=[
                pl.BlockSpec((tile, d), row_map),    # row embeddings (normalized)
                pl.BlockSpec((tile, d), col_map),    # col embeddings (normalized)
                pl.BlockSpec((tile, 1), lrow_map),   # row labels
                pl.BlockSpec((1, tile), lcol_map),   # col labels
            ],
            # One lane-dense (2, tile) partial block per row tile, resident in
            # VMEM across that row's column sweep.
            out_specs=pl.BlockSpec((None, 2, tile), out_map),
        ),
        compiler_params=pltpu.CompilerParams(
            dimension_semantics=("parallel", "arbitrary"),
            vmem_limit_bytes=vmem_limit),
        cost_estimate=cost,
    )(jnp.asarray(i_np), jnp.asarray(j_np), jnp.asarray(a_np),
      nemb, nemb, lab_row, lab_col)

    pos_sum = jnp.sum(partials[:, 0, :])
    neg_sum = jnp.sum(partials[:, 1, :])

    # Pair counts depend only on labels: pos = sum_k C(c_k, 2) via sorted runs.
    srt = jnp.sort(lab)
    left = jnp.searchsorted(srt, srt, side="left")
    right = jnp.searchsorted(srt, srt, side="right")
    sum_c_sq = jnp.sum(right - left)                        # = sum_k c_k^2
    pos_cnt = ((sum_c_sq - n) // 2).astype(jnp.float32)
    tot_pairs = jnp.float32(n * (n - 1) // 2)
    neg_cnt = tot_pairs - pos_cnt

    loss_pos = jnp.where(pos_cnt > 0, pos_sum / jnp.maximum(pos_cnt, 1.0), 0.0)
    loss_neg = jnp.where(neg_cnt > 0, neg_sum / jnp.maximum(neg_cnt, 1.0), 0.0)
    total = loss_pos + jnp.float32(lambda_neg) * loss_neg
    return total, loss_pos, loss_neg


# ---------------------------------------------------------------------------
# Pure-JAX reference mirroring the PyTorch forward.
# ---------------------------------------------------------------------------
def _reference(emb, labels, lambda_neg=1.0, target_dist=0.5):
    n = emb.shape[0]
    nrm = jnp.maximum(jnp.sqrt(jnp.sum(emb * emb, axis=1, keepdims=True)), 1e-12)
    ne = emb / nrm
    dot = jnp.matmul(ne, ne.T, precision=jax.lax.Precision.HIGHEST)
    ham = 0.5 * (1.0 - dot)
    lm = labels[None, :] == labels[:, None]
    iu = jnp.triu(jnp.ones((n, n), dtype=bool), k=1)
    pos_m = lm & iu
    neg_m = (~lm) & iu
    pos_cnt = jnp.sum(pos_m)
    neg_cnt = jnp.sum(neg_m)
    loss_pos = jnp.where(
        pos_cnt > 0,
        jnp.sum(jnp.where(pos_m, ham, 0.0)) / jnp.maximum(pos_cnt, 1), 0.0)
    loss_neg = jnp.where(
        neg_cnt > 0,
        jnp.sum(jnp.where(neg_m, (ham - target_dist) ** 2, 0.0))
        / jnp.maximum(neg_cnt, 1), 0.0)
    return loss_pos + lambda_neg * loss_neg, loss_pos, loss_neg


if __name__ == "__main__":
    def run_case(n, d, n_classes, tile, lambda_neg, target_dist, labels=None):
        key = jax.random.PRNGKey(0)
        kx, kl = jax.random.split(key)
        emb = jax.random.normal(kx, (n, d), jnp.float32)
        if labels is None:
            labels = jax.random.randint(kl, (n,), 0, n_classes, dtype=jnp.int32)
        got = hamming_refinement_loss(emb, labels, lambda_neg=lambda_neg,
                                      target_dist=target_dist, tile=tile)
        got = jax.block_until_ready(got)
        want = _reference(emb, labels, lambda_neg, target_dist)
        for g, w, name in zip(got, want, ("total", "pos", "neg")):
            assert jnp.allclose(g, w, atol=2e-5, rtol=1e-3), (name, float(g), float(w))

    # Small shapes consistent with the module (batch of embeddings + labels).
    run_case(24, 32, 4, 128, 1.0, 0.5)          # 1 tile, padding 24 -> 128
    run_case(200, 16, 5, 128, 0.7, 0.3)         # 2x2 tiles, uneven shards, padded edge
    run_case(300, 32, 3, 128, 1.0, 0.5)         # 3x3 tiles, all mask specializations
    run_case(24, 32, None, 128, 1.0, 0.5,       # no positive pairs (all labels distinct)
             labels=jnp.arange(24, dtype=jnp.int32))
    print("KERNEL_OK")
</pallas_src>

<mosaic_0001>
module attributes {stable_mosaic.version = 11 : i64} {
  func.func @kernel(%arg0: i32, %arg1: i32, %arg2: memref<1xi32, #tpu.memory_space<smem>>, %arg3: memref<1xi32, #tpu.memory_space<smem>>, %arg4: memref<1xi32, #tpu.memory_space<smem>>, %arg5: memref<128x32xf32, #tpu.memory_space<vmem>>, %arg6: memref<128x32xf32, #tpu.memory_space<vmem>>, %arg7: memref<128x1xi32, #tpu.memory_space<vmem>>, %arg8: memref<1x128xi32, #tpu.memory_space<vmem>>, %arg9: memref<1x2x128xf32, #tpu.memory_space<vmem>>) attributes {dimension_semantics = [#tpu.dimension_semantics<parallel>, #tpu.dimension_semantics<arbitrary>], iteration_bounds = array<i64: 1, 1>, scalar_prefetch = 3 : i64, scratch_operands = 0 : i64, tpu.core_type = #tpu.core_type<tc>, window_params = [{transform_indices = @transform_0, window_bounds = array<i64: 128, 32>}, {transform_indices = @transform_1, window_bounds = array<i64: 128, 32>}, {transform_indices = @transform_2, window_bounds = array<i64: 128, 1>}, {transform_indices = @transform_3, window_bounds = array<i64: 1, 128>}, {transform_indices = @transform_4, window_bounds = array<i64: 1, 2, 128>}]} {
    %c1_i32 = arith.constant 1 : i32
    %0 = arith.muli %arg0, %c1_i32 : i32
    %1 = arith.addi %0, %arg1 : i32
    %2 = arith.index_cast %1 : i32 to index
    %3 = memref.load %arg2[%2] : memref<1xi32, #tpu.memory_space<smem>>
    %4 = arith.index_cast %1 : i32 to index
    %5 = memref.load %arg3[%4] : memref<1xi32, #tpu.memory_space<smem>>
    %6 = arith.index_cast %1 : i32 to index
    %7 = memref.load %arg4[%6] : memref<1xi32, #tpu.memory_space<smem>>
    %c1_i32_0 = arith.constant 1 : i32
    %8 = arith.cmpi eq, %7, %c1_i32_0 : i32
    %c0 = arith.constant 0 : index
    %c0_1 = arith.constant 0 : index
    %9 = vector.load %arg5[%c0, %c0_1] : memref<128x32xf32, #tpu.memory_space<vmem>>, vector<128x32xf32>
    %c0_2 = arith.constant 0 : index
    %c0_3 = arith.constant 0 : index
    %10 = vector.load %arg6[%c0_2, %c0_3] : memref<128x32xf32, #tpu.memory_space<vmem>>, vector<128x32xf32>
    %cst = arith.constant dense<0.000000e+00> : vector<128x128xf32>
    %11 = tpu.matmul %9, %10, %cst {dimension_numbers = #tpu.dot_dimension_numbers<[1], [1], [0], [0], [0, 0, 1, 0], [], []>} : vector<128x32xf32>, vector<128x32xf32>, vector<128x128xf32> -> vector<128x128xf32>
    %cst_4 = arith.constant 5.000000e-01 : f32
    %12 = vector.broadcast %cst_4 : f32 to vector<128x128xf32>
    %13 = arith.mulf %12, %11 : vector<128x128xf32>
    %cst_5 = arith.constant 5.000000e-01 : f32
    %14 = vector.broadcast %cst_5 : f32 to vector<128x128xf32>
    %15 = arith.subf %14, %13 : vector<128x128xf32>
    %cst_6 = arith.constant 0.000000e+00 : f32
    %16 = vector.broadcast %cst_6 : f32 to vector<128x128xf32>
    %17 = arith.subf %16, %13 : vector<128x128xf32>
    %18 = arith.mulf %17, %17 : vector<128x128xf32>
    %c0_7 = arith.constant 0 : index
    %c0_8 = arith.constant 0 : index
    %19 = vector.load %arg7[%c0_7, %c0_8] : memref<128x1xi32, #tpu.memory_space<vmem>>, vector<128x1xi32>
    %c0_9 = arith.constant 0 : index
    %c0_10 = arith.constant 0 : index
    %20 = vector.load %arg8[%c0_9, %c0_10] : memref<1x128xi32, #tpu.memory_space<vmem>>, vector<1x128xi32>
    %21 = vector.broadcast %19 : vector<128x1xi32> to vector<128x128xi32>
    %22 = vector.broadcast %20 : vector<1x128xi32> to vector<128x128xi32>
    %23 = arith.cmpi eq, %21, %22 : vector<128x128xi32>
    %24 = arith.cmpi eq, %3, %5 : i32
    %25 = arith.andi %8, %24 : i1
    %26 = arith.cmpi ne, %3, %5 : i32
    %27 = arith.andi %8, %26 : i1
    %c0_i32 = arith.constant 0 : i32
    %28 = arith.cmpi ne, %3, %c0_i32 : i32
    %29 = arith.andi %25, %28 : i1
    %30 = arith.extui %29 : i1 to i32
    %c0_i32_11 = arith.constant 0 : i32
    %31 = arith.cmpi ne, %30, %c0_i32_11 : i32
    scf.if %31 {
      %44 = tpu.iota {dimensions = array<i32: 0>} : vector<128x128xi32>
      %45 = tpu.iota {dimensions = array<i32: 1>} : vector<128x128xi32>
      %46 = arith.cmpi sgt, %45, %44 : vector<128x128xi32>
      %47 = arith.andi %46, %23 : vector<128x128xi1>
      %cst_18 = arith.constant dense<true> : vector<128x128xi1>
      %48 = arith.xori %23, %cst_18 : vector<128x128xi1>
      %49 = arith.andi %46, %48 : vector<128x128xi1>
      %50 = arith.extui %47 : vector<128x128xi1> to vector<128x128xi32>
      %51 = arith.sitofp %50 : vector<128x128xi32> to vector<128x128xf32>
      %52 = arith.extui %49 : vector<128x128xi1> to vector<128x128xi32>
      %53 = arith.sitofp %52 : vector<128x128xi32> to vector<128x128xf32>
      %54 = arith.mulf %15, %51 : vector<128x128xf32>
      %cst_19 = arith.constant dense<0.000000e+00> : vector<128xf32>
      %55 = vector.multi_reduction <add>, %54, %cst_19 [0] : vector<128x128xf32> to vector<128xf32>
      %56 = vector.shape_cast %55 : vector<128xf32> to vector<1x128xf32>
      %57 = arith.mulf %18, %53 : vector<128x128xf32>
      %cst_20 = arith.constant dense<0.000000e+00> : vector<128xf32>
      %58 = vector.multi_reduction <add>, %57, %cst_20 [0] : vector<128x128xf32> to vector<128xf32>
      %59 = vector.shape_cast %58 : vector<128xf32> to vector<1x128xf32>
      %60 = tpu.concatenate %56, %59 in 0 : vector<1x128xf32>, vector<1x128xf32> -> vector<2x128xf32>
      %c0_21 = arith.constant 0 : index
      %c0_22 = arith.constant 0 : index
      %c0_23 = arith.constant 0 : index
      %61 = vector.load %arg9[%c0_21, %c0_22, %c0_23] : memref<1x2x128xf32, #tpu.memory_space<vmem>>, vector<1x2x128xf32>
      %62 = vector.shape_cast %61 : vector<1x2x128xf32> to vector<2x128xf32>
      %63 = vector.shape_cast %60 : vector<2x128xf32> to vector<1x2x128xf32>
      tpu.vector_store %arg9[%c0_21, %c0_22, %c0_23], %63 {strides = array<i32>} : memref<1x2x128xf32, #tpu.memory_space<vmem>>, vector<1x2x128xf32>,
    } else {
    }
    %c0_i32_12 = arith.constant 0 : i32
    %32 = arith.cmpi eq, %3, %c0_i32_12 : i32
    %33 = arith.andi %25, %32 : i1
    %34 = arith.extui %33 : i1 to i32
    %c0_i32_13 = arith.constant 0 : i32
    %35 = arith.cmpi ne, %34, %c0_i32_13 : i32
    scf.if %35 {
      %44 = tpu.iota {dimensions = array<i32: 0>} : vector<128x128xi32>
      %45 = tpu.iota {dimensions = array<i32: 1>} : vector<128x128xi32>
      %46 = arith.cmpi sgt, %45, %44 : vector<128x128xi32>
      %c24_i32 = arith.constant 24 : i32
      %47 = vector.broadcast %c24_i32 : i32 to vector<128x128xi32>
      %48 = arith.cmpi slt, %44, %47 : vector<128x128xi32>
      %49 = arith.andi %46, %48 : vector<128x128xi1>
      %c24_i32_18 = arith.constant 24 : i32
      %50 = vector.broadcast %c24_i32_18 : i32 to vector<128x128xi32>
      %51 = arith.cmpi slt, %45, %50 : vector<128x128xi32>
      %52 = arith.andi %49, %51 : vector<128x128xi1>
      %53 = arith.andi %52, %23 : vector<128x128xi1>
      %cst_19 = arith.constant dense<true> : vector<128x128xi1>
      %54 = arith.xori %23, %cst_19 : vector<128x128xi1>
      %55 = arith.andi %52, %54 : vector<128x128xi1>
      %56 = arith.extui %53 : vector<128x128xi1> to vector<128x128xi32>
      %57 = arith.sitofp %56 : vector<128x128xi32> to vector<128x128xf32>
      %58 = arith.extui %55 : vector<128x128xi1> to vector<128x128xi32>
      %59 = arith.sitofp %58 : vector<128x128xi32> to vector<128x128xf32>
      %60 = arith.mulf %15, %57 : vector<128x128xf32>
      %cst_20 = arith.constant dense<0.000000e+00> : vector<128xf32>
      %61 = vector.multi_reduction <add>, %60, %cst_20 [0] : vector<128x128xf32> to vector<128xf32>
      %62 = vector.shape_cast %61 : vector<128xf32> to vector<1x128xf32>
      %63 = arith.mulf %18, %59 : vector<128x128xf32>
      %cst_21 = arith.constant dense<0.000000e+00> : vector<128xf32>
      %64 = vector.multi_reduction <add>, %63, %cst_21 [0] : vector<128x128xf32> to vector<128xf32>
      %65 = vector.shape_cast %64 : vector<128xf32> to vector<1x128xf32>
      %66 = tpu.concatenate %62, %65 in 0 : vector<1x128xf32>, vector<1x128xf32> -> vector<2x128xf32>
      %c0_22 = arith.constant 0 : index
      %c0_23 = arith.constant 0 : index
      %c0_24 = arith.constant 0 : index
      %67 = vector.load %arg9[%c0_22, %c0_23, %c0_24] : memref<1x2x128xf32, #tpu.memory_space<vmem>>, vector<1x2x128xf32>
      %68 = vector.shape_cast %67 : vector<1x2x128xf32> to vector<2x128xf32>
      %69 = vector.shape_cast %66 : vector<2x128xf32> to vector<1x2x128xf32>
      tpu.vector_store %arg9[%c0_22, %c0_23, %c0_24], %69 {strides = array<i32>} : memref<1x2x128xf32, #tpu.memory_space<vmem>>, vector<1x2x128xf32>,
    } else {
    }
    %c0_i32_14 = arith.constant 0 : i32
    %36 = arith.cmpi ne, %5, %c0_i32_14 : i32
    %37 = arith.andi %27, %36 : i1
    %38 = arith.extui %37 : i1 to i32
    %c0_i32_15 = arith.constant 0 : i32
    %39 = arith.cmpi ne, %38, %c0_i32_15 : i32
    scf.if %39 {
      %44 = arith.extui %23 : vector<128x128xi1> to vector<128x128xi32>
      %45 = arith.sitofp %44 : vector<128x128xi32> to vector<128x128xf32>
      %cst_18 = arith.constant 1.000000e+00 : f32
      %46 = vector.broadcast %cst_18 : f32 to vector<128x128xf32>
      %47 = arith.subf %46, %45 : vector<128x128xf32>
      %48 = arith.mulf %15, %45 : vector<128x128xf32>
      %cst_19 = arith.constant dense<0.000000e+00> : vector<128xf32>
      %49 = vector.multi_reduction <add>, %48, %cst_19 [0] : vector<128x128xf32> to vector<128xf32>
      %50 = vector.shape_cast %49 : vector<128xf32> to vector<1x128xf32>
      %51 = arith.mulf %18, %47 : vector<128x128xf32>
      %cst_20 = arith.constant dense<0.000000e+00> : vector<128xf32>
      %52 = vector.multi_reduction <add>, %51, %cst_20 [0] : vector<128x128xf32> to vector<128xf32>
      %53 = vector.shape_cast %52 : vector<128xf32> to vector<1x128xf32>
      %54 = tpu.concatenate %50, %53 in 0 : vector<1x128xf32>, vector<1x128xf32> -> vector<2x128xf32>
      %c0_21 = arith.constant 0 : index
      %c0_22 = arith.constant 0 : index
      %c0_23 = arith.constant 0 : index
      %55 = vector.load %arg9[%c0_21, %c0_22, %c0_23] : memref<1x2x128xf32, #tpu.memory_space<vmem>>, vector<1x2x128xf32>
      %56 = vector.shape_cast %55 : vector<1x2x128xf32> to vector<2x128xf32>
      %57 = arith.addf %56, %54 : vector<2x128xf32>
      %c0_24 = arith.constant 0 : index
      %c0_25 = arith.constant 0 : index
      %c0_26 = arith.constant 0 : index
      %58 = vector.load %arg9[%c0_24, %c0_25, %c0_26] : memref<1x2x128xf32, #tpu.memory_space<vmem>>, vector<1x2x128xf32>
      %59 = vector.shape_cast %58 : vector<1x2x128xf32> to vector<2x128xf32>
      %60 = vector.shape_cast %57 : vector<2x128xf32> to vector<1x2x128xf32>
      tpu.vector_store %arg9[%c0_24, %c0_25, %c0_26], %60 {strides = array<i32>} : memref<1x2x128xf32, #tpu.memory_space<vmem>>, vector<1x2x128xf32>,
    } else {
    }
    %c0_i32_16 = arith.constant 0 : i32
    %40 = arith.cmpi eq, %5, %c0_i32_16 : i32
    %41 = arith.andi %27, %40 : i1
    %42 = arith.extui %41 : i1 to i32
    %c0_i32_17 = arith.constant 0 : i32
    %43 = arith.cmpi ne, %42, %c0_i32_17 : i32
    scf.if %43 {
      %44 = tpu.iota {dimensions = array<i32: 1>} : vector<128x128xi32>
      %c24_i32 = arith.constant 24 : i32
      %45 = vector.broadcast %c24_i32 : i32 to vector<128x128xi32>
      %46 = arith.cmpi slt, %44, %45 : vector<128x128xi32>
      %47 = arith.andi %46, %23 : vector<128x128xi1>
      %cst_18 = arith.constant dense<true> : vector<128x128xi1>
      %48 = arith.xori %23, %cst_18 : vector<128x128xi1>
      %49 = arith.andi %46, %48 : vector<128x128xi1>
      %50 = arith.extui %47 : vector<128x128xi1> to vector<128x128xi32>
      %51 = arith.sitofp %50 : vector<128x128xi32> to vector<128x128xf32>
      %52 = arith.extui %49 : vector<128x128xi1> to vector<128x128xi32>
      %53 = arith.sitofp %52 : vector<128x128xi32> to vector<128x128xf32>
      %54 = arith.mulf %15, %51 : vector<128x128xf32>
      %cst_19 = arith.constant dense<0.000000e+00> : vector<128xf32>
      %55 = vector.multi_reduction <add>, %54, %cst_19 [0] : vector<128x128xf32> to vector<128xf32>
      %56 = vector.shape_cast %55 : vector<128xf32> to vector<1x128xf32>
      %57 = arith.mulf %18, %53 : vector<128x128xf32>
      %cst_20 = arith.constant dense<0.000000e+00> : vector<128xf32>
      %58 = vector.multi_reduction <add>, %57, %cst_20 [0] : vector<128x128xf32> to vector<128xf32>
      %59 = vector.shape_cast %58 : vector<128xf32> to vector<1x128xf32>
      %60 = tpu.concatenate %56, %59 in 0 : vector<1x128xf32>, vector<1x128xf32> -> vector<2x128xf32>
      %c0_21 = arith.constant 0 : index
      %c0_22 = arith.constant 0 : index
      %c0_23 = arith.constant 0 : index
      %61 = vector.load %arg9[%c0_21, %c0_22, %c0_23] : memref<1x2x128xf32, #tpu.memory_space<vmem>>, vector<1x2x128xf32>
      %62 = vector.shape_cast %61 : vector<1x2x128xf32> to vector<2x128xf32>
      %63 = arith.addf %62, %60 : vector<2x128xf32>
      %c0_24 = arith.constant 0 : index
      %c0_25 = arith.constant 0 : index
      %c0_26 = arith.constant 0 : index
      %64 = vector.load %arg9[%c0_24, %c0_25, %c0_26] : memref<1x2x128xf32, #tpu.memory_space<vmem>>, vector<1x2x128xf32>
      %65 = vector.shape_cast %64 : vector<1x2x128xf32> to vector<2x128xf32>
      %66 = vector.shape_cast %63 : vector<2x128xf32> to vector<1x2x128xf32>
      tpu.vector_store %arg9[%c0_24, %c0_25, %c0_26], %66 {strides = array<i32>} : memref<1x2x128xf32, #tpu.memory_space<vmem>>, vector<1x2x128xf32>,
    } else {
    }
    return
  }
  func.func @transform_0(%arg0: i32, %arg1: i32, %arg2: memref<1xi32, #tpu.memory_space<smem>>, %arg3: memref<1xi32, #tpu.memory_space<smem>>, %arg4: memref<1xi32, #tpu.memory_space<smem>>) -> (i32, i32) {
    %c1_i32 = arith.constant 1 : i32
    %0 = arith.muli %arg0, %c1_i32 : i32
    %1 = arith.addi %0, %arg1 : i32
    %2 = arith.index_cast %1 : i32 to index
    %3 = memref.load %arg2[%2] : memref<1xi32, #tpu.memory_space<smem>>
    %c0_i32 = arith.constant 0 : i32
    %c0_i32_0 = arith.constant 0 : i32
    return %3, %c0_i32 : i32, i32
  }
  func.func @transform_1(%arg0: i32, %arg1: i32, %arg2: memref<1xi32, #tpu.memory_space<smem>>, %arg3: memref<1xi32, #tpu.memory_space<smem>>, %arg4: memref<1xi32, #tpu.memory_space<smem>>) -> (i32, i32) {
    %c1_i32 = arith.constant 1 : i32
    %0 = arith.muli %arg0, %c1_i32 : i32
    %1 = arith.addi %0, %arg1 : i32
    %2 = arith.index_cast %1 : i32 to index
    %3 = memref.load %arg3[%2] : memref<1xi32, #tpu.memory_space<smem>>
    %c0_i32 = arith.constant 0 : i32
    %c0_i32_0 = arith.constant 0 : i32
    return %3, %c0_i32 : i32, i32
  }
  func.func @transform_2(%arg0: i32, %arg1: i32, %arg2: memref<1xi32, #tpu.memory_space<smem>>, %arg3: memref<1xi32, #tpu.memory_space<smem>>, %arg4: memref<1xi32, #tpu.memory_space<smem>>) -> (i32, i32) {
    %c1_i32 = arith.constant 1 : i32
    %0 = arith.muli %arg0, %c1_i32 : i32
    %1 = arith.addi %0, %arg1 : i32
    %2 = arith.index_cast %1 : i32 to index
    %3 = memref.load %arg2[%2] : memref<1xi32, #tpu.memory_space<smem>>
    %c0_i32 = arith.constant 0 : i32
    %c0_i32_0 = arith.constant 0 : i32
    return %3, %c0_i32 : i32, i32
  }
  func.func @transform_3(%arg0: i32, %arg1: i32, %arg2: memref<1xi32, #tpu.memory_space<smem>>, %arg3: memref<1xi32, #tpu.memory_space<smem>>, %arg4: memref<1xi32, #tpu.memory_space<smem>>) -> (i32, i32) {
    %c1_i32 = arith.constant 1 : i32
    %0 = arith.muli %arg0, %c1_i32 : i32
    %1 = arith.addi %0, %arg1 : i32
    %2 = arith.index_cast %1 : i32 to index
    %3 = memref.load %arg3[%2] : memref<1xi32, #tpu.memory_space<smem>>
    %c0_i32 = arith.constant 0 : i32
    %c0_i32_0 = arith.constant 0 : i32
    return %c0_i32, %3 : i32, i32
  }
  func.func @transform_4(%arg0: i32, %arg1: i32, %arg2: memref<1xi32, #tpu.memory_space<smem>>, %arg3: memref<1xi32, #tpu.memory_space<smem>>, %arg4: memref<1xi32, #tpu.memory_space<smem>>) -> (i32, i32, i32) {
    %c1_i32 = arith.constant 1 : i32
    %0 = arith.muli %arg0, %c1_i32 : i32
    %1 = arith.addi %0, %arg1 : i32
    %2 = arith.index_cast %1 : i32 to index
    %3 = memref.load %arg2[%2] : memref<1xi32, #tpu.memory_space<smem>>
    %c0_i32 = arith.constant 0 : i32
    %c0_i32_0 = arith.constant 0 : i32
    %c0_i32_1 = arith.constant 0 : i32
    return %3, %c0_i32, %c0_i32_0 : i32, i32, i32
  }
}

</mosaic_0001>

<llo_original>
// kernel: custom-call.2
$region0: #{custom-call.2}
  %s0 = inlined_call_operand.vmem [shape: u32[24], index: 0, kind: output, shape index: {}]

// kernel: hamming_refinement_loss.1
$region0: #{hamming_refinement_loss.1}
  #allocation0 [shape = 'u32[]', space=smem, size = 0x4, offset = 0x4, fixed_abs, tag = 'smem constant byte address 0x4 - core index']
  #allocation1 [shape = 'u32[144,128]{1,0:T(1,128)}', space=vmem, size = 0x12000, scoped, tag = 'internal scratch']
  #allocation2 [shape = 's32[1]{0}', space=sflag, size = 0x4, scoped, tag = 'scoped memory for hamming_refinement_loss.1']
  #allocation3 [shape = 's32[1]{0:T(128)S(6)}', space=smem, size = 0x200, scoped, tag = 'prefetched SMEM operand 0']
  #allocation4 [shape = 's32[1]{0:T(128)S(6)}', space=smem, size = 0x200, scoped, tag = 'prefetched SMEM operand 1']
  #allocation5 [shape = 's32[1]{0:T(128)S(6)}', space=smem, size = 0x200, scoped, tag = 'prefetched SMEM operand 2']
  %s0 = inlined_call_operand.<no memory space> [shape: s32[1], index: 0, kind: input, shape index: {}, may-alias: {0,1}]
  %s1 = inlined_call_operand.<no memory space> [shape: s32[1], index: 1, kind: input, shape index: {}, may-alias: {0,1}]
  %s2 = inlined_call_operand.<no memory space> [shape: s32[1], index: 2, kind: input, shape index: {}]
  %s3 = inlined_call_operand.vmem [shape: f32[128,32], index: 3, kind: input, shape index: {}, may-alias: {3,4}]
  %s4 = inlined_call_operand.vmem [shape: f32[128,32], index: 4, kind: input, shape index: {}, may-alias: {3,4}]
  %s5 = inlined_call_operand.vmem [shape: s32[128,1], index: 5, kind: input, shape index: {}]
  %s6 = inlined_call_operand.vmem [shape: s32[1,128], index: 6, kind: input, shape index: {}]
  %s7 = inlined_call_operand.vmem [shape: f32[1,2,128], index: 7, kind: output, shape index: {}]
  %s8 = sld [smem:[#allocation0]]
  $region42: #{hamming_refinement_loss.1} parent=0
    _
  %s10 = ssub.s32 1, %s8
  %s11 = scalar_select 0, %s10, %s8
  %12 = sst [smem:[#allocation3]] %s0
  %13 = sst [smem:[#allocation4]] %s1
  %14 = sst [smem:[#allocation5]] %s2
  // Predicated region
  $region2: #{hamming_refinement_loss.1} parent=0 // pred_check
    _
  $region3: #{hamming_refinement_loss.1} parent=0 // pred_check_branch
    %16 = sbr.rel (0) target = $region5
  $region4: #{hamming_refinement_loss.1} parent=0 // pred_region
    %s17 = sadd.s32 0, 0
    %s18 = sld [smem:[#allocation3 + %s17]]
    %s19 = smul.u32 16, %s18
    %p20 = scmp.lt.s32.totalorder %s19, 15
    %s21 = scalar_select %p20, %s19, 15
    %s22 = smul.addr %s21, 8
    %s23 = scalar_lea.vmem %s3, %s22
    %s24 = sadd.s32 0, 0
    %s25 = sld [smem:[#allocation3 + %s24]]
    %s26 = smul.u32 16, %s25
  $region5: #{hamming_refinement_loss.1} parent=0 // pred_fallthru
    _
  // Predicated region
  $region6: #{hamming_refinement_loss.1} parent=0 // pred_check
    _
  $region7: #{hamming_refinement_loss.1} parent=0 // pred_check_branch
    %28 = sbr.rel (0) target = $region9
  $region8: #{hamming_refinement_loss.1} parent=0 // pred_region
    %s29 = sadd.s32 0, 0
    %s30 = sld [smem:[#allocation4 + %s29]]
    %s31 = smul.u32 16, %s30
    %p32 = scmp.lt.s32.totalorder %s31, 15
    %s33 = scalar_select %p32, %s31, 15
    %s34 = smul.addr %s33, 8
    %s35 = scalar_lea.vmem %s4, %s34
    %s36 = sadd.s32 0, 0
    %s37 = sld [smem:[#allocation4 + %s36]]
    %s38 = smul.u32 16, %s37
  $region9: #{hamming_refinement_loss.1} parent=0 // pred_fallthru
    _
  // Predicated region
  $region10: #{hamming_refinement_loss.1} parent=0 // pred_check
    _
  $region11: #{hamming_refinement_loss.1} parent=0 // pred_check_branch
    %40 = sbr.rel (0) target = $region13
  $region12: #{hamming_refinement_loss.1} parent=0 // pred_region
    %s41 = sadd.s32 0, 0
    %s42 = sld [smem:[#allocation3 + %s41]]
    %s43 = smul.u32 16, %s42
    %p44 = scmp.lt.s32.totalorder %s43, 15
    %s45 = scalar_select %p44, %s43, 15
    %s46 = smul.addr %s45, 8
    %s47 = scalar_lea.vmem %s5, %s46
    %s48 = sadd.s32 0, 0
    %s49 = sld [smem:[#allocation3 + %s48]]
    %s50 = smul.u32 16, %s49
  $region13: #{hamming_refinement_loss.1} parent=0 // pred_fallthru
    _
  // Predicated region
  $region14: #{hamming_refinement_loss.1} parent=0 // pred_check
    _
  $region15: #{hamming_refinement_loss.1} parent=0 // pred_check_branch
    %52 = sbr.rel (0) target = $region17
  $region16: #{hamming_refinement_loss.1} parent=0 // pred_region
    %s53 = sadd.s32 0, 0
    %s54 = sld [smem:[#allocation4 + %s53]]
    %p55 = scmp.lt.s32.totalorder %s54, 0
    %s56 = scalar_select %p55, %s54, 0
    %s57 = scalar_lea.vmem %s6, %s56
    %s58 = sadd.s32 0, 0
    %s59 = sld [smem:[#allocation4 + %s58]]
  $region17: #{hamming_refinement_loss.1} parent=0 // pred_fallthru
    _
  %s60 = sadd.s32 0, 0
  %s61 = sld [smem:[#allocation3 + %s60]]
  %s62 = smul.u32 16, %s61
  %p63 = scmp.lt.s32.totalorder %s62, 15
  %s64 = scalar_select %p63, %s62, 15
  %s65 = smul.addr %s64, 8
  %s66 = scalar_lea.vmem %s3, %s65
  %s67 = sadd.s32 0, 0
  %s68 = sld [smem:[#allocation4 + %s67]]
  %s69 = smul.u32 16, %s68
  %p70 = scmp.lt.s32.totalorder %s69, 15
  %s71 = scalar_select %p70, %s69, 15
  %s72 = smul.addr %s71, 8
  %s73 = scalar_lea.vmem %s4, %s72
  %s74 = sadd.s32 0, 0
  %s75 = sld [smem:[#allocation3 + %s74]]
  %s76 = smul.u32 16, %s75
  %p77 = scmp.lt.s32.totalorder %s76, 15
  %s78 = scalar_select %p77, %s76, 15
  %s79 = smul.addr %s78, 8
  %s80 = scalar_lea.vmem %s5, %s79
  %s81 = sadd.s32 0, 0
  %s82 = sld [smem:[#allocation4 + %s81]]
  %p83 = scmp.lt.s32.totalorder %s82, 0
  %s84 = scalar_select %p83, %s82, 0
  %s85 = scalar_lea.vmem %s6, %s84
  %s86 = sadd.s32 0, 0
  %s87 = sld [smem:[#allocation3 + %s86]]
  %p88 = scmp.lt.s32.totalorder %s87, 0
  %s89 = scalar_select %p88, %s87, 0
  %s90 = smul.addr %s89, 2
  %s91 = scalar_lea.vmem %s7, %s90
  %s92 = sadd.s32 0, 0
  %s93 = sld [smem:[#allocation3 + %s92]]
  %s94 = smul.u32 16, %s93
  %p95 = scmp.lt.s32.totalorder %s94, 15
  %s96 = scalar_select %p95, %s94, 15
  %s97 = smul.addr %s96, 8
  %s98 = scalar_lea.vmem %s3, %s97
  %s99 = sadd.s32 0, 0
  %s100 = sld [smem:[#allocation3 + %s99]]
  %s101 = smul.u32 16, %s100
  %s102 = sadd.s32 0, 0
  %s103 = sld [smem:[#allocation4 + %s102]]
  %s104 = smul.u32 16, %s103
  %p105 = scmp.lt.s32.totalorder %s104, 15
  %s106 = scalar_select %p105, %s104, 15
  %s107 = smul.addr %s106, 8
  %s108 = scalar_lea.vmem %s4, %s107
  %s109 = sadd.s32 0, 0
  %s110 = sld [smem:[#allocation4 + %s109]]
  %s111 = smul.u32 16, %s110
  %s112 = sadd.s32 0, 0
  %s113 = sld [smem:[#allocation3 + %s112]]
  %s114 = smul.u32 16, %s113
  %p115 = scmp.lt.s32.totalorder %s114, 15
  %s116 = scalar_select %p115, %s114, 15
  %s117 = smul.addr %s116, 8
  %s118 = scalar_lea.vmem %s5, %s117
  %s119 = sadd.s32 0, 0
  %s120 = sld [smem:[#allocation3 + %s119]]
  %s121 = smul.u32 16, %s120
  %s122 = sadd.s32 0, 0
  %s123 = sld [smem:[#allocation4 + %s122]]
  %p124 = scmp.lt.s32.totalorder %s123, 0
  %s125 = scalar_select %p124, %s123, 0
  %s126 = scalar_lea.vmem %s6, %s125
  %s127 = sadd.s32 0, 0
  %s128 = sld [smem:[#allocation4 + %s127]]
  %s129 = sadd.s32 0, 0
  %s130 = sld [smem:[#allocation3 + %s129]]
  %p131 = scmp.lt.s32.totalorder %s130, 0
  %s132 = scalar_select %p131, %s130, 0
  %s133 = smul.addr %s132, 2
  %s134 = scalar_lea.vmem %s7, %s133
  %s135 = sadd.s32 0, 0
  %s136 = sld [smem:[#allocation3 + %s135]]
  %s137 = sadd.s32 0, 0
  %s138 = sld [smem:[#allocation3 + %s137]]
  %s139 = sld [smem:[#allocation4 + %s137]]
  %s140 = sld [smem:[#allocation5 + %s137]]
  %p141 = scmp.eq.s32.totalorder %s140, 1
  %v142 = vld [vmem:[%s98] sm:$0xff]
  %v143 = vld [vmem:[%s98 + $0x8] sm:$0xff]
  %v144 = vld [vmem:[%s98 + $0x10] sm:$0xff]
  %v145 = vld [vmem:[%s98 + $0x18] sm:$0xff]
  %v146 = vld [vmem:[%s98 + $0x20] sm:$0xff]
  %v147 = vld [vmem:[%s98 + $0x28] sm:$0xff]
  %v148 = vld [vmem:[%s98 + $0x30] sm:$0xff]
  %v149 = vld [vmem:[%s98 + $0x38] sm:$0xff]
  %v150 = vld [vmem:[%s98 + $0x40] sm:$0xff]
  %v151 = vld [vmem:[%s98 + $0x48] sm:$0xff]
  %v152 = vld [vmem:[%s98 + $0x50] sm:$0xff]
  %v153 = vld [vmem:[%s98 + $0x58] sm:$0xff]
  %v154 = vld [vmem:[%s98 + $0x60] sm:$0xff]
  %v155 = vld [vmem:[%s98 + $0x68] sm:$0xff]
  %v156 = vld [vmem:[%s98 + $0x70] sm:$0xff]
  %v157 = vld [vmem:[%s98 + $0x78] sm:$0xff]
  %v158 = vld [vmem:[%s108] sm:$0xff]
  %v159 = vld [vmem:[%s108 + $0x8] sm:$0xff]
  %v160 = vld [vmem:[%s108 + $0x10] sm:$0xff]
  %v161 = vld [vmem:[%s108 + $0x18] sm:$0xff]
  %v162 = vld [vmem:[%s108 + $0x20] sm:$0xff]
  %v163 = vld [vmem:[%s108 + $0x28] sm:$0xff]
  %v164 = vld [vmem:[%s108 + $0x30] sm:$0xff]
  %v165 = vld [vmem:[%s108 + $0x38] sm:$0xff]
  %v166 = vld [vmem:[%s108 + $0x40] sm:$0xff]
  %v167 = vld [vmem:[%s108 + $0x48] sm:$0xff]
  %v168 = vld [vmem:[%s108 + $0x50] sm:$0xff]
  %v169 = vld [vmem:[%s108 + $0x58] sm:$0xff]
  %v170 = vld [vmem:[%s108 + $0x60] sm:$0xff]
  %v171 = vld [vmem:[%s108 + $0x68] sm:$0xff]
  %v172 = vld [vmem:[%s108 + $0x70] sm:$0xff]
  %v173 = vld [vmem:[%s108 + $0x78] sm:$0xff]
  %vm174 = vcmask 261120
  %v176 = vsel %vm174, %v142, 0
  %v179 = vsel %vm174, %v143, 0
  %v182 = vsel %vm174, %v144, 0
  %v185 = vsel %vm174, %v145, 0
  %v188 = vsel %vm174, %v146, 0
  %v191 = vsel %vm174, %v147, 0
  %v194 = vsel %vm174, %v148, 0
  %v197 = vsel %vm174, %v149, 0
  %v200 = vsel %vm174, %v150, 0
  %v203 = vsel %vm174, %v151, 0
  %v206 = vsel %vm174, %v152, 0
  %v209 = vsel %vm174, %v153, 0
  %v212 = vsel %vm174, %v154, 0
  %v215 = vsel %vm174, %v155, 0
  %v218 = vsel %vm174, %v156, 0
  %v221 = vsel %vm174, %v157, 0
  %v224 = vsel %vm174, %v158, 0
  %v227 = vsel %vm174, %v159, 0
  %v230 = vsel %vm174, %v160, 0
  %v233 = vsel %vm174, %v161, 0
  %v236 = vsel %vm174, %v162, 0
  %v239 = vsel %vm174, %v163, 0
  %v242 = vsel %vm174, %v164, 0
  %v245 = vsel %vm174, %v165, 0
  %v248 = vsel %vm174, %v166, 0
  %v251 = vsel %vm174, %v167, 0
  %v254 = vsel %vm174, %v168, 0
  %v257 = vsel %vm174, %v169, 0
  %v260 = vsel %vm174, %v170, 0
  %v263 = vsel %vm174, %v171, 0
  %v266 = vsel %vm174, %v172, 0
  %v269 = vsel %vm174, %v173, 0
  %271 = vmatprep.subr.mxu0 0.0
  %272 = vmatpush1.xpose.msra.mxu0 %v224
  %273 = vmatprep.subr.mxu0 0.0
  %274 = vmatpush1.xpose.msra.mxu0 %v227
  %275 = vmatprep.subr.mxu0 0.0
  %276 = vmatpush1.xpose.msra.mxu0 %v230
  %277 = vmatprep.subr.mxu0 0.0
  %278 = vmatpush1.xpose.msra.mxu0 %v233
  %279 = vmatprep.subr.mxu0 0.0
  %280 = vmatpush1.xpose.msra.mxu0 %v236
  %281 = vmatprep.subr.mxu0 0.0
  %282 = vmatpush1.xpose.msra.mxu0 %v239
  %283 = vmatprep.subr.mxu0 0.0
  %284 = vmatpush1.xpose.msra.mxu0 %v242
  %285 = vmatprep.subr.mxu0 0.0
  %286 = vmatpush1.xpose.msra.mxu0 %v245
  %287 = vmatprep.subr.mxu0 0.0
  %288 = vmatpush1.xpose.msra.mxu0 %v248
  %289 = vmatprep.subr.mxu0 0.0
  %290 = vmatpush1.xpose.msra.mxu0 %v251
  %291 = vmatprep.subr.mxu0 0.0
  %292 = vmatpush1.xpose.msra.mxu0 %v254
  %293 = vmatprep.subr.mxu0 0.0
  %294 = vmatpush1.xpose.msra.mxu0 %v257
  %295 = vmatprep.subr.mxu0 0.0
  %296 = vmatpush1.xpose.msra.mxu0 %v260
  %297 = vmatprep.subr.mxu0 0.0
  %298 = vmatpush1.xpose.msra.mxu0 %v263
  %299 = vmatprep.subr.mxu0 0.0
  %300 = vmatpush1.xpose.msra.mxu0 %v266
  %301 = vmatprep.subr.mxu0 0.0
  %302 = vmatpush1.xpose.msra.mxu0 %v269
  %303 = vmatprep.subr.mxu0 0.0
  %304 = vmatpush1.xpose.msra.mxu0 0.0
  %305 = vmatprep.subr.mxu0 0.0
  %306 = vmatpush1.xpose.msra.mxu0 0.0
  %307 = vmatprep.subr.mxu0 0.0
  %308 = vmatpush1.xpose.msra.mxu0 0.0
  %309 = vmatprep.subr.mxu0 0.0
  %310 = vmatpush1.xpose.msra.mxu0 0.0
  %311 = vmatprep.subr.mxu0 0.0
  %312 = vmatpush1.xpose.msra.mxu0 0.0
  %313 = vmatprep.subr.mxu0 0.0
  %314 = vmatpush1.xpose.msra.mxu0 0.0
  %315 = vmatprep.subr.mxu0 0.0
  %316 = vmatpush1.xpose.msra.mxu0 0.0
  %317 = vmatprep.subr.mxu0 0.0
  %318 = vmatpush1.xpose.msra.mxu0 0.0
  %319 = vmatprep.subr.mxu0 0.0
  %320 = vmatpush1.xpose.msra.mxu0 0.0
  %321 = vmatprep.subr.mxu0 0.0
  %322 = vmatpush1.xpose.msra.mxu0 0.0
  %323 = vmatprep.subr.mxu0 0.0
  %324 = vmatpush1.xpose.msra.mxu0 0.0
  %325 = vmatprep.subr.mxu0 0.0
  %326 = vmatpush1.xpose.msra.mxu0 0.0
  %327 = vmatprep.subr.mxu0 0.0
  %328 = vmatpush1.xpose.msra.mxu0 0.0
  %329 = vmatprep.subr.mxu0 0.0
  %330 = vmatpush1.xpose.msra.mxu0 0.0
  %331 = vmatprep.subr.mxu0 0.0
  %332 = vmatpush1.xpose.msra.mxu0 0.0
  %333 = vmatprep.subr.mxu0 0.0
  %334 = vmatpush1.xpose.msra.mxu0 0.0
  %335 = vmatprep.mubr.f32.mxu0 0.0
  %336 = vmatmul.mubr.f32.gmra.mrb[0].mxu0 %v176
  %v337 = vpop.f32.mrb[0].mxu0
  %v338 = vadd.f32 0.0, %v337
  %v339 = vpop.f32.mrb[0].mxu0
  %340 = vmatprep.mubr.f32.mxu0 0.0
  %341 = vmatmul.mubr.f32.gmra.mrb[0].mxu0 %v179
  %v342 = vpop.f32.mrb[0].mxu0
  %v343 = vadd.f32 0.0, %v342
  %v344 = vpop.f32.mrb[0].mxu0
  %345 = vmatprep.mubr.f32.mxu0 0.0
  %346 = vmatmul.mubr.f32.gmra.mrb[0].mxu0 %v182
  %v347 = vpop.f32.mrb[0].mxu0
  %v348 = vadd.f32 0.0, %v347
  %v349 = vpop.f32.mrb[0].mxu0
  %350 = vmatprep.mubr.f32.mxu0 0.0
  %351 = vmatmul.mubr.f32.gmra.mrb[0].mxu0 %v185
  %v352 = vpop.f32.mrb[0].mxu0
  %v353 = vadd.f32 0.0, %v352
  %v354 = vpop.f32.mrb[0].mxu0
  %355 = vmatprep.mubr.f32.mxu0 0.0
  %356 = vmatmul.mubr.f32.gmra.mrb[0].mxu0 %v188
  %v357 = vpop.f32.mrb[0].mxu0
  %v358 = vadd.f32 0.0, %v357
  %v359 = vpop.f32.mrb[0].mxu0
  %360 = vmatprep.mubr.f32.mxu0 0.0
  %361 = vmatmul.mubr.f32.gmra.mrb[0].mxu0 %v191
  %v362 = vpop.f32.mrb[0].mxu0
  %v363 = vadd.f32 0.0, %v362
  %v364 = vpop.f32.mrb[0].mxu0
  %365 = vmatprep.mubr.f32.mxu0 0.0
  %366 = vmatmul.mubr.f32.gmra.mrb[0].mxu0 %v194
  %v367 = vpop.f32.mrb[0].mxu0
  %v368 = vadd.f32 0.0, %v367
  %v369 = vpop.f32.mrb[0].mxu0
  %370 = vmatprep.mubr.f32.mxu0 0.0
  %371 = vmatmul.mubr.f32.gmra.mrb[0].mxu0 %v197
  %v372 = vpop.f32.mrb[0].mxu0
  %v373 = vadd.f32 0.0, %v372
  %v374 = vpop.f32.mrb[0].mxu0
  %375 = vmatprep.mubr.f32.mxu0 0.0
  %376 = vmatmul.mubr.f32.gmra.mrb[0].mxu0 %v200
  %v377 = vpop.f32.mrb[0].mxu0
  %v378 = vadd.f32 0.0, %v377
  %v379 = vpop.f32.mrb[0].mxu0
  %380 = vmatprep.mubr.f32.mxu0 0.0
  %381 = vmatmul.mubr.f32.gmra.mrb[0].mxu0 %v203
  %v382 = vpop.f32.mrb[0].mxu0
  %v383 = vadd.f32 0.0, %v382
  %v384 = vpop.f32.mrb[0].mxu0
  %385 = vmatprep.mubr.f32.mxu0 0.0
  %386 = vmatmul.mubr.f32.gmra.mrb[0].mxu0 %v206
  %v387 = vpop.f32.mrb[0].mxu0
  %v388 = vadd.f32 0.0, %v387
  %v389 = vpop.f32.mrb[0].mxu0
  %390 = vmatprep.mubr.f32.mxu0 0.0
  %391 = vmatmul.mubr.f32.gmra.mrb[0].mxu0 %v209
  %v392 = vpop.f32.mrb[0].mxu0
  %v393 = vadd.f32 0.0, %v392
  %v394 = vpop.f32.mrb[0].mxu0
  %395 = vmatprep.mubr.f32.mxu0 0.0
  %396 = vmatmul.mubr.f32.gmra.mrb[0].mxu0 %v212
  %v397 = vpop.f32.mrb[0].mxu0
  %v398 = vadd.f32 0.0, %v397
  %v399 = vpop.f32.mrb[0].mxu0
  %400 = vmatprep.mubr.f32.mxu0 0.0
  %401 = vmatmul.mubr.f32.gmra.mrb[0].mxu0 %v215
  %v402 = vpop.f32.mrb[0].mxu0
  %v403 = vadd.f32 0.0, %v402
  %v404 = vpop.f32.mrb[0].mxu0
  %405 = vmatprep.mubr.f32.mxu0 0.0
  %406 = vmatmul.mubr.f32.gmra.mrb[0].mxu0 %v218
  %v407 = vpop.f32.mrb[0].mxu0
  %v408 = vadd.f32 0.0, %v407
  %v409 = vpop.f32.mrb[0].mxu0
  %410 = vmatprep.mubr.f32.mxu0 0.0
  %411 = vmatmul.mubr.f32.gmra.mrb[0].mxu0 %v221
  %v412 = vpop.f32.mrb[0].mxu0
  %v413 = vadd.f32 0.0, %v412
  %v414 = vpop.f32.mrb[0].mxu0
  %415 = vdwg.mxu0
  %v416 = vmul.f32 %v338, 0.5
  %v417 = vmul.f32 %v343, 0.5
  %v418 = vmul.f32 %v348, 0.5
  %v419 = vmul.f32 %v353, 0.5
  %v420 = vmul.f32 %v358, 0.5
  %v421 = vmul.f32 %v363, 0.5
  %v422 = vmul.f32 %v368, 0.5
  %v423 = vmul.f32 %v373, 0.5
  %v424 = vmul.f32 %v378, 0.5
  %v425 = vmul.f32 %v383, 0.5
  %v426 = vmul.f32 %v388, 0.5
  %v427 = vmul.f32 %v393, 0.5
  %v428 = vmul.f32 %v398, 0.5
  %v429 = vmul.f32 %v403, 0.5
  %v430 = vmul.f32 %v408, 0.5
  %v431 = vmul.f32 %v413, 0.5
  %v432 = vsub.f32 0.5, %v416
  %v433 = vsub.f32 0.5, %v417
  %v434 = vsub.f32 0.5, %v418
  %v435 = vsub.f32 0.5, %v419
  %v436 = vsub.f32 0.5, %v420
  %v437 = vsub.f32 0.5, %v421
  %v438 = vsub.f32 0.5, %v422
  %v439 = vsub.f32 0.5, %v423
  %v440 = vsub.f32 0.5, %v424
  %v441 = vsub.f32 0.5, %v425
  %v442 = vsub.f32 0.5, %v426
  %v443 = vsub.f32 0.5, %v427
  %v444 = vsub.f32 0.5, %v428
  %v445 = vsub.f32 0.5, %v429
  %v446 = vsub.f32 0.5, %v430
  %v447 = vsub.f32 0.5, %v431
  %v448 = vsub.f32 0.0, %v416
  %v449 = vsub.f32 0.0, %v417
  %v450 = vsub.f32 0.0, %v418
  %v451 = vsub.f32 0.0, %v419
  %v452 = vsub.f32 0.0, %v420
  %v453 = vsub.f32 0.0, %v421
  %v454 = vsub.f32 0.0, %v422
  %v455 = vsub.f32 0.0, %v423
  %v456 = vsub.f32 0.0, %v424
  %v457 = vsub.f32 0.0, %v425
  %v458 = vsub.f32 0.0, %v426
  %v459 = vsub.f32 0.0, %v427
  %v460 = vsub.f32 0.0, %v428
  %v461 = vsub.f32 0.0, %v429
  %v462 = vsub.f32 0.0, %v430
  %v463 = vsub.f32 0.0, %v431
  %v464 = vmul.f32 %v448, %v448
  %v465 = vmul.f32 %v449, %v449
  %v466 = vmul.f32 %v450, %v450
  %v467 = vmul.f32 %v451, %v451
  %v468 = vmul.f32 %v452, %v452
  %v469 = vmul.f32 %v453, %v453
  %v470 = vmul.f32 %v454, %v454
  %v471 = vmul.f32 %v455, %v455
  %v472 = vmul.f32 %v456, %v456
  %v473 = vmul.f32 %v457, %v457
  %v474 = vmul.f32 %v458, %v458
  %v475 = vmul.f32 %v459, %v459
  %v476 = vmul.f32 %v460, %v460
  %v477 = vmul.f32 %v461, %v461
  %v478 = vmul.f32 %v462, %v462
  %v479 = vmul.f32 %v463, %v463
  %v480 = vld [vmem:[%s118] sm:$0xff]
  %v481 = vld [vmem:[%s118 + $0x8] sm:$0xff]
  %v482 = vld [vmem:[%s118 + $0x10] sm:$0xff]
  %v483 = vld [vmem:[%s118 + $0x18] sm:$0xff]
  %v484 = vld [vmem:[%s118 + $0x20] sm:$0xff]
  %v485 = vld [vmem:[%s118 + $0x28] sm:$0xff]
  %v486 = vld [vmem:[%s118 + $0x30] sm:$0xff]
  %v487 = vld [vmem:[%s118 + $0x38] sm:$0xff]
  %v488 = vld [vmem:[%s118 + $0x40] sm:$0xff]
  %v489 = vld [vmem:[%s118 + $0x48] sm:$0xff]
  %v490 = vld [vmem:[%s118 + $0x50] sm:$0xff]
  %v491 = vld [vmem:[%s118 + $0x58] sm:$0xff]
  %v492 = vld [vmem:[%s118 + $0x60] sm:$0xff]
  %v493 = vld [vmem:[%s118 + $0x68] sm:$0xff]
  %v494 = vld [vmem:[%s118 + $0x70] sm:$0xff]
  %v495 = vld [vmem:[%s118 + $0x78] sm:$0xff]
  %v496 = vld [vmem:[%s126] sm:$0x1]
  %497 = vset.pattern.permute.xlu0 0
  %498 = vperm.xlu0 %497, %v480
  %v499 = vpop.permute.xlu0 %498
  %500 = vset.pattern.permute.xlu0 0
  %501 = vperm.xlu0 %500, %v481
  %v502 = vpop.permute.xlu0 %501
  %503 = vset.pattern.permute.xlu0 0
  %504 = vperm.xlu0 %503, %v482
  %v505 = vpop.permute.xlu0 %504
  %506 = vset.pattern.permute.xlu0 0
  %507 = vperm.xlu0 %506, %v483
  %v508 = vpop.permute.xlu0 %507
  %509 = vset.pattern.permute.xlu0 0
  %510 = vperm.xlu0 %509, %v484
  %v511 = vpop.permute.xlu0 %510
  %512 = vset.pattern.permute.xlu0 0
  %513 = vperm.xlu0 %512, %v485
  %v514 = vpop.permute.xlu0 %513
  %515 = vset.pattern.permute.xlu0 0
  %516 = vperm.xlu0 %515, %v486
  %v517 = vpop.permute.xlu0 %516
  %518 = vset.pattern.permute.xlu0 0
  %519 = vperm.xlu0 %518, %v487
  %v520 = vpop.permute.xlu0 %519
  %521 = vset.pattern.permute.xlu0 0
  %522 = vperm.xlu0 %521, %v488
  %v523 = vpop.permute.xlu0 %522
  %524 = vset.pattern.permute.xlu0 0
  %525 = vperm.xlu0 %524, %v489
  %v526 = vpop.permute.xlu0 %525
  %527 = vset.pattern.permute.xlu0 0
  %528 = vperm.xlu0 %527, %v490
  %v529 = vpop.permute.xlu0 %528
  %530 = vset.pattern.permute.xlu0 0
  %531 = vperm.xlu0 %530, %v491
  %v532 = vpop.permute.xlu0 %531
  %533 = vset.pattern.permute.xlu0 0
  %534 = vperm.xlu0 %533, %v492
  %v535 = vpop.permute.xlu0 %534
  %536 = vset.pattern.permute.xlu0 0
  %537 = vperm.xlu0 %536, %v493
  %v538 = vpop.permute.xlu0 %537
  %539 = vset.pattern.permute.xlu0 0
  %540 = vperm.xlu0 %539, %v494
  %v541 = vpop.permute.xlu0 %540
  %542 = vset.pattern.permute.xlu0 0
  %543 = vperm.xlu0 %542, %v495
  %v544 = vpop.permute.xlu0 %543
  %v545 = vlaneseq
  %v546 = vshrl.u32 %v545, 7
  %v547 = vsub.s32 0, %v546
  %v548 = vrot.slane %v496, %v547
  %vm549 = vcmp.eq.s32.totalorder %v499, %v548
  %vm550 = vcmp.eq.s32.totalorder %v502, %v548
  %vm551 = vcmp.eq.s32.totalorder %v505, %v548
  %vm552 = vcmp.eq.s32.totalorder %v508, %v548
  %vm553 = vcmp.eq.s32.totalorder %v511, %v548
  %vm554 = vcmp.eq.s32.totalorder %v514, %v548
  %vm555 = vcmp.eq.s32.totalorder %v517, %v548
  %vm556 = vcmp.eq.s32.totalorder %v520, %v548
  %vm557 = vcmp.eq.s32.totalorder %v523, %v548
  %vm558 = vcmp.eq.s32.totalorder %v526, %v548
  %vm559 = vcmp.eq.s32.totalorder %v529, %v548
  %vm560 = vcmp.eq.s32.totalorder %v532, %v548
  %vm561 = vcmp.eq.s32.totalorder %v535, %v548
  %vm562 = vcmp.eq.s32.totalorder %v538, %v548
  %vm563 = vcmp.eq.s32.totalorder %v541, %v548
  %vm564 = vcmp.eq.s32.totalorder %v544, %v548
  %p565 = scmp.eq.s32.totalorder %s138, %s139
  %p566 = pnand %p141, %p565
  %p567 = pneg %p566
  %p568 = scmp.ne.s32.totalorder %s138, %s139
  %p569 = pnand %p141, %p568
  %p570 = pneg %p569
  %p571 = scmp.ne.s32.totalorder %s138, 0
  %p572 = pnand %p567, %p571
  %p573 = pneg %p572
  // Predicated region
  $region18: #{hamming_refinement_loss.1} parent=0 // pred_check
    _
  $region19: #{hamming_refinement_loss.1} parent=0 // pred_check_branch
    %575 = sbr.rel (%p572) target = $region21
  $region20: #{hamming_refinement_loss.1} parent=0 // pred_region
    %v576 = vlaneseq
    %v577 = vshrl.u32 %v576, 7
    %v578 = vadd.s32 %v577, 8
    %v579 = vadd.s32 %v577, 16
    %v580 = vadd.s32 %v577, 24
    %v581 = vadd.s32 %v577, 32
    %v582 = vadd.s32 %v577, 40
    %v583 = vadd.s32 %v577, 48
    %v584 = vadd.s32 %v577, 56
    %v585 = vadd.s32 %v577, 64
    %v586 = vadd.s32 %v577, 72
    %v587 = vadd.s32 %v577, 80
    %v588 = vadd.s32 %v577, 88
    %v589 = vadd.s32 %v577, 96
    %v590 = vadd.s32 %v577, 104
    %v591 = vadd.s32 %v577, 112
    %v592 = vadd.s32 %v577, 120
    %v593 = vlaneseq
    %v594 = vand.u32 %v593, 127
    %vm595 = vcmp.gt.s32.totalorder %v594, %v577
    %vm596 = vcmp.gt.s32.totalorder %v594, %v578
    %vm597 = vcmp.gt.s32.totalorder %v594, %v579
    %vm598 = vcmp.gt.s32.totalorder %v594, %v580
    %vm599 = vcmp.gt.s32.totalorder %v594, %v581
    %vm600 = vcmp.gt.s32.totalorder %v594, %v582
    %vm601 = vcmp.gt.s32.totalorder %v594, %v583
    %vm602 = vcmp.gt.s32.totalorder %v594, %v584
    %vm603 = vcmp.gt.s32.totalorder %v594, %v585
    %vm604 = vcmp.gt.s32.totalorder %v594, %v586
    %vm605 = vcmp.gt.s32.totalorder %v594, %v587
    %vm606 = vcmp.gt.s32.totalorder %v594, %v588
    %vm607 = vcmp.gt.s32.totalorder %v594, %v589
    %vm608 = vcmp.gt.s32.totalorder %v594, %v590
    %vm609 = vcmp.gt.s32.totalorder %v594, %v591
    %vm610 = vcmp.gt.s32.totalorder %v594, %v592
    %vm611 = vmand %vm595, %vm549
    %vm612 = vmand %vm596, %vm550
    %vm613 = vmand %vm597, %vm551
    %vm614 = vmand %vm598, %vm552
    %vm615 = vmand %vm599, %vm553
    %vm616 = vmand %vm600, %vm554
    %vm617 = vmand %vm601, %vm555
    %vm618 = vmand %vm602, %vm556
    %vm619 = vmand %vm603, %vm557
    %vm620 = vmand %vm604, %vm558
    %vm621 = vmand %vm605, %vm559
    %vm622 = vmand %vm606, %vm560
    %vm623 = vmand %vm607, %vm561
    %vm624 = vmand %vm608, %vm562
    %vm625 = vmand %vm609, %vm563
    %vm626 = vmand %vm610, %vm564
    %vm627 = vmxor %vm549, 1
    %vm628 = vmxor %vm550, 1
    %vm629 = vmxor %vm551, 1
    %vm630 = vmxor %vm552, 1
    %vm631 = vmxor %vm553, 1
    %vm632 = vmxor %vm554, 1
    %vm633 = vmxor %vm555, 1
    %vm634 = vmxor %vm556, 1
    %vm635 = vmxor %vm557, 1
    %vm636 = vmxor %vm558, 1
    %vm637 = vmxor %vm559, 1
    %vm638 = vmxor %vm560, 1
    %vm639 = vmxor %vm561, 1
    %vm640 = vmxor %vm562, 1
    %vm641 = vmxor %vm563, 1
    %vm642 = vmxor %vm564, 1
    %vm643 = vmand %vm595, %vm627
    %vm644 = vmand %vm596, %vm628
    %vm645 = vmand %vm597, %vm629
    %vm646 = vmand %vm598, %vm630
    %vm647 = vmand %vm599, %vm631
    %vm648 = vmand %vm600, %vm632
    %vm649 = vmand %vm601, %vm633
    %vm650 = vmand %vm602, %vm634
    %vm651 = vmand %vm603, %vm635
    %vm652 = vmand %vm604, %vm636
    %vm653 = vmand %vm605, %vm637
    %vm654 = vmand %vm606, %vm638
    %vm655 = vmand %vm607, %vm639
    %vm656 = vmand %vm608, %vm640
    %vm657 = vmand %vm609, %vm641
    %vm658 = vmand %vm610, %vm642
    %v659 = vsel %vm611, 1, 0
    %v660 = vsel %vm612, 1, 0
    %v661 = vsel %vm613, 1, 0
    %v662 = vsel %vm614, 1, 0
    %v663 = vsel %vm615, 1, 0
    %v664 = vsel %vm616, 1, 0
    %v665 = vsel %vm617, 1, 0
    %v666 = vsel %vm618, 1, 0
    %v667 = vsel %vm619, 1, 0
    %v668 = vsel %vm620, 1, 0
    %v669 = vsel %vm621, 1, 0
    %v670 = vsel %vm622, 1, 0
    %v671 = vsel %vm623, 1, 0
    %v672 = vsel %vm624, 1, 0
    %v673 = vsel %vm625, 1, 0
    %v674 = vsel %vm626, 1, 0
    %v675 = vcvt.s32.f32 %v659
    %v676 = vcvt.s32.f32 %v660
    %v677 = vcvt.s32.f32 %v661
    %v678 = vcvt.s32.f32 %v662
    %v679 = vcvt.s32.f32 %v663
    %v680 = vcvt.s32.f32 %v664
    %v681 = vcvt.s32.f32 %v665
    %v682 = vcvt.s32.f32 %v666
    %v683 = vcvt.s32.f32 %v667
    %v684 = vcvt.s32.f32 %v668
    %v685 = vcvt.s32.f32 %v669
    %v686 = vcvt.s32.f32 %v670
    %v687 = vcvt.s32.f32 %v671
    %v688 = vcvt.s32.f32 %v672
    %v689 = vcvt.s32.f32 %v673
    %v690 = vcvt.s32.f32 %v674
    %v691 = vsel %vm643, 1, 0
    %v692 = vsel %vm644, 1, 0
    %v693 = vsel %vm645, 1, 0
    %v694 = vsel %vm646, 1, 0
    %v695 = vsel %vm647, 1, 0
    %v696 = vsel %vm648, 1, 0
    %v697 = vsel %vm649, 1, 0
    %v698 = vsel %vm650, 1, 0
    %v699 = vsel %vm651, 1, 0
    %v700 = vsel %vm652, 1, 0
    %v701 = vsel %vm653, 1, 0
    %v702 = vsel %vm654, 1, 0
    %v703 = vsel %vm655, 1, 0
    %v704 = vsel %vm656, 1, 0
    %v705 = vsel %vm657, 1, 0
    %v706 = vsel %vm658, 1, 0
    %v707 = vcvt.s32.f32 %v691
    %v708 = vcvt.s32.f32 %v692
    %v709 = vcvt.s32.f32 %v693
    %v710 = vcvt.s32.f32 %v694
    %v711 = vcvt.s32.f32 %v695
    %v712 = vcvt.s32.f32 %v696
    %v713 = vcvt.s32.f32 %v697
    %v714 = vcvt.s32.f32 %v698
    %v715 = vcvt.s32.f32 %v699
    %v716 = vcvt.s32.f32 %v700
    %v717 = vcvt.s32.f32 %v701
    %v718 = vcvt.s32.f32 %v702
    %v719 = vcvt.s32.f32 %v703
    %v720 = vcvt.s32.f32 %v704
    %v721 = vcvt.s32.f32 %v705
    %v722 = vcvt.s32.f32 %v706
    %v723 = vmul.f32 %v432, %v675
    %v724 = vmul.f32 %v433, %v676
    %v725 = vmul.f32 %v434, %v677
    %v726 = vmul.f32 %v435, %v678
    %v727 = vmul.f32 %v436, %v679
    %v728 = vmul.f32 %v437, %v680
    %v729 = vmul.f32 %v438, %v681
    %v730 = vmul.f32 %v439, %v682
    %v731 = vmul.f32 %v440, %v683
    %v732 = vmul.f32 %v441, %v684
    %v733 = vmul.f32 %v442, %v685
    %v734 = vmul.f32 %v443, %v686
    %v735 = vmul.f32 %v444, %v687
    %v736 = vmul.f32 %v445, %v688
    %v737 = vmul.f32 %v446, %v689
    %v738 = vmul.f32 %v447, %v690
    %v739 = vadd.f32 %v723, %v724
    %v740 = vadd.f32 %v739, %v725
    %v741 = vadd.f32 %v740, %v726
    %v742 = vadd.f32 %v741, %v727
    %v743 = vadd.f32 %v742, %v728
    %v744 = vadd.f32 %v743, %v729
    %v745 = vadd.f32 %v744, %v730
    %v746 = vadd.f32 %v745, %v731
    %v747 = vadd.f32 %v746, %v732
    %v748 = vadd.f32 %v747, %v733
    %v749 = vadd.f32 %v748, %v734
    %v750 = vadd.f32 %v749, %v735
    %v751 = vadd.f32 %v750, %v736
    %v752 = vadd.f32 %v751, %v737
    %v753 = vadd.f32 %v752, %v738
    %v754 = vrot.slane %v753, 4
    %v755 = vadd.f32 %v753, %v754
    %v756 = vrot.slane %v755, 2
    %v757 = vadd.f32 %v755, %v756
    %v758 = vrot.slane %v757, 1
    %v759 = vadd.f32 %v757, %v758
    %v760 = vmul.f32 %v464, %v707
    %v761 = vmul.f32 %v465, %v708
    %v762 = vmul.f32 %v466, %v709
    %v763 = vmul.f32 %v467, %v710
    %v764 = vmul.f32 %v468, %v711
    %v765 = vmul.f32 %v469, %v712
    %v766 = vmul.f32 %v470, %v713
    %v767 = vmul.f32 %v471, %v714
    %v768 = vmul.f32 %v472, %v715
    %v769 = vmul.f32 %v473, %v716
    %v770 = vmul.f32 %v474, %v717
    %v771 = vmul.f32 %v475, %v718
    %v772 = vmul.f32 %v476, %v719
    %v773 = vmul.f32 %v477, %v720
    %v774 = vmul.f32 %v478, %v721
    %v775 = vmul.f32 %v479, %v722
    %v776 = vadd.f32 %v760, %v761
    %v777 = vadd.f32 %v776, %v762
    %v778 = vadd.f32 %v777, %v763
    %v779 = vadd.f32 %v778, %v764
    %v780 = vadd.f32 %v779, %v765
    %v781 = vadd.f32 %v780, %v766
    %v782 = vadd.f32 %v781, %v767
    %v783 = vadd.f32 %v782, %v768
    %v784 = vadd.f32 %v783, %v769
    %v785 = vadd.f32 %v784, %v770
    %v786 = vadd.f32 %v785, %v771
    %v787 = vadd.f32 %v786, %v772
    %v788 = vadd.f32 %v787, %v773
    %v789 = vadd.f32 %v788, %v774
    %v790 = vadd.f32 %v789, %v775
    %v791 = vrot.slane %v790, 4
    %v792 = vadd.f32 %v790, %v791
    %v793 = vrot.slane %v792, 2
    %v794 = vadd.f32 %v792, %v793
    %v795 = vrot.slane %v794, 1
    %v796 = vadd.f32 %v794, %v795
    %vm797 = vcmask 1040384
    %v798 = vsel %vm797, %v759, %v796
    %799 = vst [vmem:[%s134] sm:$0x3] %v798
  $region21: #{hamming_refinement_loss.1} parent=0 // pred_fallthru
    _
  %p800 = scmp.eq.s32.totalorder %s138, 0
  %p801 = pnand %p567, %p800
  %p802 = pneg %p801
  // Predicated region
  $region22: #{hamming_refinement_loss.1} parent=0 // pred_check
    _
  $region23: #{hamming_refinement_loss.1} parent=0 // pred_check_branch
    %804 = sbr.rel (%p801) target = $region25
  $region24: #{hamming_refinement_loss.1} parent=0 // pred_region
    %v805 = vlaneseq
    %v806 = vshrl.u32 %v805, 7
    %v807 = vadd.s32 %v806, 8
    %v808 = vadd.s32 %v806, 16
    %v809 = vadd.s32 %v806, 24
    %v810 = vadd.s32 %v806, 32
    %v811 = vadd.s32 %v806, 40
    %v812 = vadd.s32 %v806, 48
    %v813 = vadd.s32 %v806, 56
    %v814 = vadd.s32 %v806, 64
    %v815 = vadd.s32 %v806, 72
    %v816 = vadd.s32 %v806, 80
    %v817 = vadd.s32 %v806, 88
    %v818 = vadd.s32 %v806, 96
    %v819 = vadd.s32 %v806, 104
    %v820 = vadd.s32 %v806, 112
    %v821 = vadd.s32 %v806, 120
    %v822 = vlaneseq
    %v823 = vand.u32 %v822, 127
    %vm824 = vcmp.gt.s32.totalorder %v823, %v806
    %vm825 = vcmp.gt.s32.totalorder %v823, %v807
    %vm826 = vcmp.gt.s32.totalorder %v823, %v808
    %vm827 = vcmp.gt.s32.totalorder %v823, %v809
    %vm828 = vcmp.gt.s32.totalorder %v823, %v810
    %vm829 = vcmp.gt.s32.totalorder %v823, %v811
    %vm830 = vcmp.gt.s32.totalorder %v823, %v812
    %vm831 = vcmp.gt.s32.totalorder %v823, %v813
    %vm832 = vcmp.gt.s32.totalorder %v823, %v814
    %vm833 = vcmp.gt.s32.totalorder %v823, %v815
    %vm834 = vcmp.gt.s32.totalorder %v823, %v816
    %vm835 = vcmp.gt.s32.totalorder %v823, %v817
    %vm836 = vcmp.gt.s32.totalorder %v823, %v818
    %vm837 = vcmp.gt.s32.totalorder %v823, %v819
    %vm838 = vcmp.gt.s32.totalorder %v823, %v820
    %vm839 = vcmp.gt.s32.totalorder %v823, %v821
    %vm840 = vcmp.lt.s32.totalorder %v806, 24
    %vm841 = vcmp.lt.s32.totalorder %v807, 24
    %vm842 = vcmp.lt.s32.totalorder %v808, 24
    %vm843 = vcmp.lt.s32.totalorder %v809, 24
    %vm844 = vcmp.lt.s32.totalorder %v810, 24
    %vm845 = vcmp.lt.s32.totalorder %v811, 24
    %vm846 = vcmp.lt.s32.totalorder %v812, 24
    %vm847 = vcmp.lt.s32.totalorder %v813, 24
    %vm848 = vcmp.lt.s32.totalorder %v814, 24
    %vm849 = vcmp.lt.s32.totalorder %v815, 24
    %vm850 = vcmp.lt.s32.totalorder %v816, 24
    %vm851 = vcmp.lt.s32.totalorder %v817, 24
    %vm852 = vcmp.lt.s32.totalorder %v818, 24
    %vm853 = vcmp.lt.s32.totalorder %v819, 24
    %vm854 = vcmp.lt.s32.totalorder %v820, 24
    %vm855 = vcmp.lt.s32.totalorder %v821, 24
    %vm856 = vmand %vm824, %vm840
    %vm857 = vmand %vm825, %vm841
    %vm858 = vmand %vm826, %vm842
    %vm859 = vmand %vm827, %vm843
    %vm860 = vmand %vm828, %vm844
    %vm861 = vmand %vm829, %vm845
    %vm862 = vmand %vm830, %vm846
    %vm863 = vmand %vm831, %vm847
    %vm864 = vmand %vm832, %vm848
    %vm865 = vmand %vm833, %vm849
    %vm866 = vmand %vm834, %vm850
    %vm867 = vmand %vm835, %vm851
    %vm868 = vmand %vm836, %vm852
    %vm869 = vmand %vm837, %vm853
    %vm870 = vmand %vm838, %vm854
    %vm871 = vmand %vm839, %vm855
    %vm872 = vcmp.lt.s32.totalorder %v823, 24
    %vm873 = vmand %vm856, %vm872
    %vm874 = vmand %vm857, %vm872
    %vm875 = vmand %vm858, %vm872
    %vm876 = vmand %vm859, %vm872
    %vm877 = vmand %vm860, %vm872
    %vm878 = vmand %vm861, %vm872
    %vm879 = vmand %vm862, %vm872
    %vm880 = vmand %vm863, %vm872
    %vm881 = vmand %vm864, %vm872
    %vm882 = vmand %vm865, %vm872
    %vm883 = vmand %vm866, %vm872
    %vm884 = vmand %vm867, %vm872
    %vm885 = vmand %vm868, %vm872
    %vm886 = vmand %vm869, %vm872
    %vm887 = vmand %vm870, %vm872
    %vm888 = vmand %vm871, %vm872
    %vm889 = vmand %vm873, %vm549
    %vm890 = vmand %vm874, %vm550
    %vm891 = vmand %vm875, %vm551
    %vm892 = vmand %vm876, %vm552
    %vm893 = vmand %vm877, %vm553
    %vm894 = vmand %vm878, %vm554
    %vm895 = vmand %vm879, %vm555
    %vm896 = vmand %vm880, %vm556
    %vm897 = vmand %vm881, %vm557
    %vm898 = vmand %vm882, %vm558
    %vm899 = vmand %vm883, %vm559
    %vm900 = vmand %vm884, %vm560
    %vm901 = vmand %vm885, %vm561
    %vm902 = vmand %vm886, %vm562
    %vm903 = vmand %vm887, %vm563
    %vm904 = vmand %vm888, %vm564
    %vm905 = vmxor %vm549, 1
    %vm906 = vmxor %vm550, 1
    %vm907 = vmxor %vm551, 1
    %vm908 = vmxor %vm552, 1
    %vm909 = vmxor %vm553, 1
    %vm910 = vmxor %vm554, 1
    %vm911 = vmxor %vm555, 1
    %vm912 = vmxor %vm556, 1
    %vm913 = vmxor %vm557, 1
    %vm914 = vmxor %vm558, 1
    %vm915 = vmxor %vm559, 1
    %vm916 = vmxor %vm560, 1
    %vm917 = vmxor %vm561, 1
    %vm918 = vmxor %vm562, 1
    %vm919 = vmxor %vm563, 1
    %vm920 = vmxor %vm564, 1
    %vm921 = vmand %vm873, %vm905
    %vm922 = vmand %vm874, %vm906
    %vm923 = vmand %vm875, %vm907
    %vm924 = vmand %vm876, %vm908
    %vm925 = vmand %vm877, %vm909
    %vm926 = vmand %vm878, %vm910
    %vm927 = vmand %vm879, %vm911
    %vm928 = vmand %vm880, %vm912
    %vm929 = vmand %vm881, %vm913
    %vm930 = vmand %vm882, %vm914
    %vm931 = vmand %vm883, %vm915
    %vm932 = vmand %vm884, %vm916
    %vm933 = vmand %vm885, %vm917
    %vm934 = vmand %vm886, %vm918
    %vm935 = vmand %vm887, %vm919
    %vm936 = vmand %vm888, %vm920
    %v937 = vsel %vm889, 1, 0
    %v938 = vsel %vm890, 1, 0
    %v939 = vsel %vm891, 1, 0
    %v940 = vsel %vm892, 1, 0
    %v941 = vsel %vm893, 1, 0
    %v942 = vsel %vm894, 1, 0
    %v943 = vsel %vm895, 1, 0
    %v944 = vsel %vm896, 1, 0
    %v945 = vsel %vm897, 1, 0
    %v946 = vsel %vm898, 1, 0
    %v947 = vsel %vm899, 1, 0
    %v948 = vsel %vm900, 1, 0
    %v949 = vsel %vm901, 1, 0
    %v950 = vsel %vm902, 1, 0
    %v951 = vsel %vm903, 1, 0
    %v952 = vsel %vm904, 1, 0
    %v953 = vcvt.s32.f32 %v937
    %v954 = vcvt.s32.f32 %v938
    %v955 = vcvt.s32.f32 %v939
    %v956 = vcvt.s32.f32 %v940
    %v957 = vcvt.s32.f32 %v941
    %v958 = vcvt.s32.f32 %v942
    %v959 = vcvt.s32.f32 %v943
    %v960 = vcvt.s32.f32 %v944
    %v961 = vcvt.s32.f32 %v945
    %v962 = vcvt.s32.f32 %v946
    %v963 = vcvt.s32.f32 %v947
    %v964 = vcvt.s32.f32 %v948
    %v965 = vcvt.s32.f32 %v949
    %v966 = vcvt.s32.f32 %v950
    %v967 = vcvt.s32.f32 %v951
    %v968 = vcvt.s32.f32 %v952
    %v969 = vsel %vm921, 1, 0
    %v970 = vsel %vm922, 1, 0
    %v971 = vsel %vm923, 1, 0
    %v972 = vsel %vm924, 1, 0
    %v973 = vsel %vm925, 1, 0
    %v974 = vsel %vm926, 1, 0
    %v975 = vsel %vm927, 1, 0
    %v976 = vsel %vm928, 1, 0
    %v977 = vsel %vm929, 1, 0
    %v978 = vsel %vm930, 1, 0
    %v979 = vsel %vm931, 1, 0
    %v980 = vsel %vm932, 1, 0
    %v981 = vsel %vm933, 1, 0
    %v982 = vsel %vm934, 1, 0
    %v983 = vsel %vm935, 1, 0
    %v984 = vsel %vm936, 1, 0
    %v985 = vcvt.s32.f32 %v969
    %v986 = vcvt.s32.f32 %v970
    %v987 = vcvt.s32.f32 %v971
    %v988 = vcvt.s32.f32 %v972
    %v989 = vcvt.s32.f32 %v973
    %v990 = vcvt.s32.f32 %v974
    %v991 = vcvt.s32.f32 %v975
    %v992 = vcvt.s32.f32 %v976
    %v993 = vcvt.s32.f32 %v977
    %v994 = vcvt.s32.f32 %v978
    %v995 = vcvt.s32.f32 %v979
    %v996 = vcvt.s32.f32 %v980
    %v997 = vcvt.s32.f32 %v981
    %v998 = vcvt.s32.f32 %v982
    %v999 = vcvt.s32.f32 %v983
    %v1000 = vcvt.s32.f32 %v984
    %v1001 = vmul.f32 %v432, %v953
    %v1002 = vmul.f32 %v433, %v954
    %v1003 = vmul.f32 %v434, %v955
    %v1004 = vmul.f32 %v435, %v956
    %v1005 = vmul.f32 %v436, %v957
    %v1006 = vmul.f32 %v437, %v958
    %v1007 = vmul.f32 %v438, %v959
    %v1008 = vmul.f32 %v439, %v960
    %v1009 = vmul.f32 %v440, %v961
    %v1010 = vmul.f32 %v441, %v962
    %v1011 = vmul.f32 %v442, %v963
    %v1012 = vmul.f32 %v443, %v964
    %v1013 = vmul.f32 %v444, %v965
    %v1014 = vmul.f32 %v445, %v966
    %v1015 = vmul.f32 %v446, %v967
    %v1016 = vmul.f32 %v447, %v968
    %v1017 = vadd.f32 %v1001, %v1002
    %v1018 = vadd.f32 %v1017, %v1003
    %v1019 = vadd.f32 %v1018, %v1004
    %v1020 = vadd.f32 %v1019, %v1005
    %v1021 = vadd.f32 %v1020, %v1006
    %v1022 = vadd.f32 %v1021, %v1007
    %v1023 = vadd.f32 %v1022, %v1008
    %v1024 = vadd.f32 %v1023, %v1009
    %v1025 = vadd.f32 %v1024, %v1010
    %v1026 = vadd.f32 %v1025, %v1011
    %v1027 = vadd.f32 %v1026, %v1012
    %v1028 = vadd.f32 %v1027, %v1013
    %v1029 = vadd.f32 %v1028, %v1014
    %v1030 = vadd.f32 %v1029, %v1015
    %v1031 = vadd.f32 %v1030, %v1016
    %v1032 = vrot.slane %v1031, 4
    %v1033 = vadd.f32 %v1031, %v1032
    %v1034 = vrot.slane %v1033, 2
    %v1035 = vadd.f32 %v1033, %v1034
    %v1036 = vrot.slane %v1035, 1
    %v1037 = vadd.f32 %v1035, %v1036
    %v1038 = vmul.f32 %v464, %v985
    %v1039 = vmul.f32 %v465, %v986
    %v1040 = vmul.f32 %v466, %v987
    %v1041 = vmul.f32 %v467, %v988
    %v1042 = vmul.f32 %v468, %v989
    %v1043 = vmul.f32 %v469, %v990
    %v1044 = vmul.f32 %v470, %v991
    %v1045 = vmul.f32 %v471, %v992
    %v1046 = vmul.f32 %v472, %v993
    %v1047 = vmul.f32 %v473, %v994
    %v1048 = vmul.f32 %v474, %v995
    %v1049 = vmul.f32 %v475, %v996
    %v1050 = vmul.f32 %v476, %v997
    %v1051 = vmul.f32 %v477, %v998
    %v1052 = vmul.f32 %v478, %v999
    %v1053 = vmul.f32 %v479, %v1000
    %v1054 = vadd.f32 %v1038, %v1039
    %v1055 = vadd.f32 %v1054, %v1040
    %v1056 = vadd.f32 %v1055, %v1041
    %v1057 = vadd.f32 %v1056, %v1042
    %v1058 = vadd.f32 %v1057, %v1043
    %v1059 = vadd.f32 %v1058, %v1044
    %v1060 = vadd.f32 %v1059, %v1045
    %v1061 = vadd.f32 %v1060, %v1046
    %v1062 = vadd.f32 %v1061, %v1047
    %v1063 = vadd.f32 %v1062, %v1048
    %v1064 = vadd.f32 %v1063, %v1049
    %v1065 = vadd.f32 %v1064, %v1050
    %v1066 = vadd.f32 %v1065, %v1051
    %v1067 = vadd.f32 %v1066, %v1052
    %v1068 = vadd.f32 %v1067, %v1053
    %v1069 = vrot.slane %v1068, 4
    %v1070 = vadd.f32 %v1068, %v1069
    %v1071 = vrot.slane %v1070, 2
    %v1072 = vadd.f32 %v1070, %v1071
    %v1073 = vrot.slane %v1072, 1
    %v1074 = vadd.f32 %v1072, %v1073
    %vm1075 = vcmask 1040384
    %v1076 = vsel %vm1075, %v1037, %v1074
    %1077 = vst [vmem:[%s134] sm:$0x3] %v1076
  $region25: #{hamming_refinement_loss.1} parent=0 // pred_fallthru
    _
  %p1078 = scmp.ne.s32.totalorder %s139, 0
  %p1079 = pnand %p570, %p1078
  %p1080 = pneg %p1079
  // Predicated region
  $region26: #{hamming_refinement_loss.1} parent=0 // pred_check
    _
  $region27: #{hamming_refinement_loss.1} parent=0 // pred_check_branch
    %1082 = sbr.rel (%p1079) target = $region29
  $region28: #{hamming_refinement_loss.1} parent=0 // pred_region
    %v1083 = vsel %vm549, 1, 0
    %v1084 = vsel %vm550, 1, 0
    %v1085 = vsel %vm551, 1, 0
    %v1086 = vsel %vm552, 1, 0
    %v1087 = vsel %vm553, 1, 0
    %v1088 = vsel %vm554, 1, 0
    %v1089 = vsel %vm555, 1, 0
    %v1090 = vsel %vm556, 1, 0
    %v1091 = vsel %vm557, 1, 0
    %v1092 = vsel %vm558, 1, 0
    %v1093 = vsel %vm559, 1, 0
    %v1094 = vsel %vm560, 1, 0
    %v1095 = vsel %vm561, 1, 0
    %v1096 = vsel %vm562, 1, 0
    %v1097 = vsel %vm563, 1, 0
    %v1098 = vsel %vm564, 1, 0
    %v1099 = vcvt.s32.f32 %v1083
    %v1100 = vcvt.s32.f32 %v1084
    %v1101 = vcvt.s32.f32 %v1085
    %v1102 = vcvt.s32.f32 %v1086
    %v1103 = vcvt.s32.f32 %v1087
    %v1104 = vcvt.s32.f32 %v1088
    %v1105 = vcvt.s32.f32 %v1089
    %v1106 = vcvt.s32.f32 %v1090
    %v1107 = vcvt.s32.f32 %v1091
    %v1108 = vcvt.s32.f32 %v1092
    %v1109 = vcvt.s32.f32 %v1093
    %v1110 = vcvt.s32.f32 %v1094
    %v1111 = vcvt.s32.f32 %v1095
    %v1112 = vcvt.s32.f32 %v1096
    %v1113 = vcvt.s32.f32 %v1097
    %v1114 = vcvt.s32.f32 %v1098
    %v1115 = vsub.f32 1.0, %v1099
    %v1116 = vsub.f32 1.0, %v1100
    %v1117 = vsub.f32 1.0, %v1101
    %v1118 = vsub.f32 1.0, %v1102
    %v1119 = vsub.f32 1.0, %v1103
    %v1120 = vsub.f32 1.0, %v1104
    %v1121 = vsub.f32 1.0, %v1105
    %v1122 = vsub.f32 1.0, %v1106
    %v1123 = vsub.f32 1.0, %v1107
    %v1124 = vsub.f32 1.0, %v1108
    %v1125 = vsub.f32 1.0, %v1109
    %v1126 = vsub.f32 1.0, %v1110
    %v1127 = vsub.f32 1.0, %v1111
    %v1128 = vsub.f32 1.0, %v1112
    %v1129 = vsub.f32 1.0, %v1113
    %v1130 = vsub.f32 1.0, %v1114
    %v1131 = vmul.f32 %v432, %v1099
    %v1132 = vmul.f32 %v433, %v1100
    %v1133 = vmul.f32 %v434, %v1101
    %v1134 = vmul.f32 %v435, %v1102
    %v1135 = vmul.f32 %v436, %v1103
    %v1136 = vmul.f32 %v437, %v1104
    %v1137 = vmul.f32 %v438, %v1105
    %v1138 = vmul.f32 %v439, %v1106
    %v1139 = vmul.f32 %v440, %v1107
    %v1140 = vmul.f32 %v441, %v1108
    %v1141 = vmul.f32 %v442, %v1109
    %v1142 = vmul.f32 %v443, %v1110
    %v1143 = vmul.f32 %v444, %v1111
    %v1144 = vmul.f32 %v445, %v1112
    %v1145 = vmul.f32 %v446, %v1113
    %v1146 = vmul.f32 %v447, %v1114
    %v1147 = vadd.f32 %v1131, %v1132
    %v1148 = vadd.f32 %v1147, %v1133
    %v1149 = vadd.f32 %v1148, %v1134
    %v1150 = vadd.f32 %v1149, %v1135
    %v1151 = vadd.f32 %v1150, %v1136
    %v1152 = vadd.f32 %v1151, %v1137
    %v1153 = vadd.f32 %v1152, %v1138
    %v1154 = vadd.f32 %v1153, %v1139
    %v1155 = vadd.f32 %v1154, %v1140
    %v1156 = vadd.f32 %v1155, %v1141
    %v1157 = vadd.f32 %v1156, %v1142
    %v1158 = vadd.f32 %v1157, %v1143
    %v1159 = vadd.f32 %v1158, %v1144
    %v1160 = vadd.f32 %v1159, %v1145
    %v1161 = vadd.f32 %v1160, %v1146
    %v1162 = vrot.slane %v1161, 4
    %v1163 = vadd.f32 %v1161, %v1162
    %v1164 = vrot.slane %v1163, 2
    %v1165 = vadd.f32 %v1163, %v1164
    %v1166 = vrot.slane %v1165, 1
    %v1167 = vadd.f32 %v1165, %v1166
    %v1168 = vmul.f32 %v464, %v1115
    %v1169 = vmul.f32 %v465, %v1116
    %v1170 = vmul.f32 %v466, %v1117
    %v1171 = vmul.f32 %v467, %v1118
    %v1172 = vmul.f32 %v468, %v1119
    %v1173 = vmul.f32 %v469, %v1120
    %v1174 = vmul.f32 %v470, %v1121
    %v1175 = vmul.f32 %v471, %v1122
    %v1176 = vmul.f32 %v472, %v1123
    %v1177 = vmul.f32 %v473, %v1124
    %v1178 = vmul.f32 %v474, %v1125
    %v1179 = vmul.f32 %v475, %v1126
    %v1180 = vmul.f32 %v476, %v1127
    %v1181 = vmul.f32 %v477, %v1128
    %v1182 = vmul.f32 %v478, %v1129
    %v1183 = vmul.f32 %v479, %v1130
    %v1184 = vadd.f32 %v1168, %v1169
    %v1185 = vadd.f32 %v1184, %v1170
    %v1186 = vadd.f32 %v1185, %v1171
    %v1187 = vadd.f32 %v1186, %v1172
    %v1188 = vadd.f32 %v1187, %v1173
    %v1189 = vadd.f32 %v1188, %v1174
    %v1190 = vadd.f32 %v1189, %v1175
    %v1191 = vadd.f32 %v1190, %v1176
    %v1192 = vadd.f32 %v1191, %v1177
    %v1193 = vadd.f32 %v1192, %v1178
    %v1194 = vadd.f32 %v1193, %v1179
    %v1195 = vadd.f32 %v1194, %v1180
    %v1196 = vadd.f32 %v1195, %v1181
    %v1197 = vadd.f32 %v1196, %v1182
    %v1198 = vadd.f32 %v1197, %v1183
    %v1199 = vrot.slane %v1198, 4
    %v1200 = vadd.f32 %v1198, %v1199
    %v1201 = vrot.slane %v1200, 2
    %v1202 = vadd.f32 %v1200, %v1201
    %v1203 = vrot.slane %v1202, 1
    %v1204 = vadd.f32 %v1202, %v1203
    %vm1205 = vcmask 1040384
    %v1206 = vsel %vm1205, %v1167, %v1204
    %v1207 = vld [vmem:[%s134] sm:$0x3]
    %v1208 = vadd.f32 %v1207, %v1206
    %1209 = vst [vmem:[%s134] sm:$0x3] %v1208
  $region29: #{hamming_refinement_loss.1} parent=0 // pred_fallthru
    _
  %p1210 = scmp.eq.s32.totalorder %s139, 0
  %p1211 = pnand %p570, %p1210
  %p1212 = pneg %p1211
  // Predicated region
  $region30: #{hamming_refinement_loss.1} parent=0 // pred_check
    _
  $region31: #{hamming_refinement_loss.1} parent=0 // pred_check_branch
    %1214 = sbr.rel (%p1211) target = $region33
  $region32: #{hamming_refinement_loss.1} parent=0 // pred_region
    %v1215 = vlaneseq
    %v1216 = vand.u32 %v1215, 127
    %vm1217 = vcmp.lt.s32.totalorder %v1216, 24
    %vm1218 = vmand %vm1217, %vm549
    %vm1219 = vmand %vm1217, %vm550
    %vm1220 = vmand %vm1217, %vm551
    %vm1221 = vmand %vm1217, %vm552
    %vm1222 = vmand %vm1217, %vm553
    %vm1223 = vmand %vm1217, %vm554
    %vm1224 = vmand %vm1217, %vm555
    %vm1225 = vmand %vm1217, %vm556
    %vm1226 = vmand %vm1217, %vm557
    %vm1227 = vmand %vm1217, %vm558
    %vm1228 = vmand %vm1217, %vm559
    %vm1229 = vmand %vm1217, %vm560
    %vm1230 = vmand %vm1217, %vm561
    %vm1231 = vmand %vm1217, %vm562
    %vm1232 = vmand %vm1217, %vm563
    %vm1233 = vmand %vm1217, %vm564
    %vm1234 = vmxor %vm549, 1
    %vm1235 = vmxor %vm550, 1
    %vm1236 = vmxor %vm551, 1
    %vm1237 = vmxor %vm552, 1
    %vm1238 = vmxor %vm553, 1
    %vm1239 = vmxor %vm554, 1
    %vm1240 = vmxor %vm555, 1
    %vm1241 = vmxor %vm556, 1
    %vm1242 = vmxor %vm557, 1
    %vm1243 = vmxor %vm558, 1
    %vm1244 = vmxor %vm559, 1
    %vm1245 = vmxor %vm560, 1
    %vm1246 = vmxor %vm561, 1
    %vm1247 = vmxor %vm562, 1
    %vm1248 = vmxor %vm563, 1
    %vm1249 = vmxor %vm564, 1
    %vm1250 = vmand %vm1217, %vm1234
    %vm1251 = vmand %vm1217, %vm1235
    %vm1252 = vmand %vm1217, %vm1236
    %vm1253 = vmand %vm1217, %vm1237
    %vm1254 = vmand %vm1217, %vm1238
    %vm1255 = vmand %vm1217, %vm1239
    %vm1256 = vmand %vm1217, %vm1240
    %vm1257 = vmand %vm1217, %vm1241
    %vm1258 = vmand %vm1217, %vm1242
    %vm1259 = vmand %vm1217, %vm1243
    %vm1260 = vmand %vm1217, %vm1244
    %vm1261 = vmand %vm1217, %vm1245
    %vm1262 = vmand %vm1217, %vm1246
    %vm1263 = vmand %vm1217, %vm1247
    %vm1264 = vmand %vm1217, %vm1248
    %vm1265 = vmand %vm1217, %vm1249
    %v1266 = vsel %vm1218, 1, 0
    %v1267 = vsel %vm1219, 1, 0
    %v1268 = vsel %vm1220, 1, 0
    %v1269 = vsel %vm1221, 1, 0
    %v1270 = vsel %vm1222, 1, 0
    %v1271 = vsel %vm1223, 1, 0
    %v1272 = vsel %vm1224, 1, 0
    %v1273 = vsel %vm1225, 1, 0
    %v1274 = vsel %vm1226, 1, 0
    %v1275 = vsel %vm1227, 1, 0
    %v1276 = vsel %vm1228, 1, 0
    %v1277 = vsel %vm1229, 1, 0
    %v1278 = vsel %vm1230, 1, 0
    %v1279 = vsel %vm1231, 1, 0
    %v1280 = vsel %vm1232, 1, 0
    %v1281 = vsel %vm1233, 1, 0
    %v1282 = vcvt.s32.f32 %v1266
    %v1283 = vcvt.s32.f32 %v1267
    %v1284 = vcvt.s32.f32 %v1268
    %v1285 = vcvt.s32.f32 %v1269
    %v1286 = vcvt.s32.f32 %v1270
    %v1287 = vcvt.s32.f32 %v1271
    %v1288 = vcvt.s32.f32 %v1272
    %v1289 = vcvt.s32.f32 %v1273
    %v1290 = vcvt.s32.f32 %v1274
    %v1291 = vcvt.s32.f32 %v1275
    %v1292 = vcvt.s32.f32 %v1276
    %v1293 = vcvt.s32.f32 %v1277
    %v1294 = vcvt.s32.f32 %v1278
    %v1295 = vcvt.s32.f32 %v1279
    %v1296 = vcvt.s32.f32 %v1280
    %v1297 = vcvt.s32.f32 %v1281
    %v1298 = vsel %vm1250, 1, 0
    %v1299 = vsel %vm1251, 1, 0
    %v1300 = vsel %vm1252, 1, 0
    %v1301 = vsel %vm1253, 1, 0
    %v1302 = vsel %vm1254, 1, 0
    %v1303 = vsel %vm1255, 1, 0
    %v1304 = vsel %vm1256, 1, 0
    %v1305 = vsel %vm1257, 1, 0
    %v1306 = vsel %vm1258, 1, 0
    %v1307 = vsel %vm1259, 1, 0
    %v1308 = vsel %vm1260, 1, 0
    %v1309 = vsel %vm1261, 1, 0
    %v1310 = vsel %vm1262, 1, 0
    %v1311 = vsel %vm1263, 1, 0
    %v1312 = vsel %vm1264, 1, 0
    %v1313 = vsel %vm1265, 1, 0
    %v1314 = vcvt.s32.f32 %v1298
    %v1315 = vcvt.s32.f32 %v1299
    %v1316 = vcvt.s32.f32 %v1300
    %v1317 = vcvt.s32.f32 %v1301
    %v1318 = vcvt.s32.f32 %v1302
    %v1319 = vcvt.s32.f32 %v1303
    %v1320 = vcvt.s32.f32 %v1304
    %v1321 = vcvt.s32.f32 %v1305
    %v1322 = vcvt.s32.f32 %v1306
    %v1323 = vcvt.s32.f32 %v1307
    %v1324 = vcvt.s32.f32 %v1308
    %v1325 = vcvt.s32.f32 %v1309
    %v1326 = vcvt.s32.f32 %v1310
    %v1327 = vcvt.s32.f32 %v1311
    %v1328 = vcvt.s32.f32 %v1312
    %v1329 = vcvt.s32.f32 %v1313
    %v1330 = vmul.f32 %v432, %v1282
    %v1331 = vmul.f32 %v433, %v1283
    %v1332 = vmul.f32 %v434, %v1284
    %v1333 = vmul.f32 %v435, %v1285
    %v1334 = vmul.f32 %v436, %v1286
    %v1335 = vmul.f32 %v437, %v1287
    %v1336 = vmul.f32 %v438, %v1288
    %v1337 = vmul.f32 %v439, %v1289
    %v1338 = vmul.f32 %v440, %v1290
    %v1339 = vmul.f32 %v441, %v1291
    %v1340 = vmul.f32 %v442, %v1292
    %v1341 = vmul.f32 %v443, %v1293
    %v1342 = vmul.f32 %v444, %v1294
    %v1343 = vmul.f32 %v445, %v1295
    %v1344 = vmul.f32 %v446, %v1296
    %v1345 = vmul.f32 %v447, %v1297
    %v1346 = vadd.f32 %v1330, %v1331
    %v1347 = vadd.f32 %v1346, %v1332
    %v1348 = vadd.f32 %v1347, %v1333
    %v1349 = vadd.f32 %v1348, %v1334
    %v1350 = vadd.f32 %v1349, %v1335
    %v1351 = vadd.f32 %v1350, %v1336
    %v1352 = vadd.f32 %v1351, %v1337
    %v1353 = vadd.f32 %v1352, %v1338
    %v1354 = vadd.f32 %v1353, %v1339
    %v1355 = vadd.f32 %v1354, %v1340
    %v1356 = vadd.f32 %v1355, %v1341
    %v1357 = vadd.f32 %v1356, %v1342
    %v1358 = vadd.f32 %v1357, %v1343
    %v1359 = vadd.f32 %v1358, %v1344
    %v1360 = vadd.f32 %v1359, %v1345
    %v1361 = vrot.slane %v1360, 4
    %v1362 = vadd.f32 %v1360, %v1361
    %v1363 = vrot.slane %v1362, 2
    %v1364 = vadd.f32 %v1362, %v1363
    %v1365 = vrot.slane %v1364, 1
    %v1366 = vadd.f32 %v1364, %v1365
    %v1367 = vmul.f32 %v464, %v1314
    %v1368 = vmul.f32 %v465, %v1315
    %v1369 = vmul.f32 %v466, %v1316
    %v1370 = vmul.f32 %v467, %v1317
    %v1371 = vmul.f32 %v468, %v1318
    %v1372 = vmul.f32 %v469, %v1319
    %v1373 = vmul.f32 %v470, %v1320
    %v1374 = vmul.f32 %v471, %v1321
    %v1375 = vmul.f32 %v472, %v1322
    %v1376 = vmul.f32 %v473, %v1323
    %v1377 = vmul.f32 %v474, %v1324
    %v1378 = vmul.f32 %v475, %v1325
    %v1379 = vmul.f32 %v476, %v1326
    %v1380 = vmul.f32 %v477, %v1327
    %v1381 = vmul.f32 %v478, %v1328
    %v1382 = vmul.f32 %v479, %v1329
    %v1383 = vadd.f32 %v1367, %v1368
    %v1384 = vadd.f32 %v1383, %v1369
    %v1385 = vadd.f32 %v1384, %v1370
    %v1386 = vadd.f32 %v1385, %v1371
    %v1387 = vadd.f32 %v1386, %v1372
    %v1388 = vadd.f32 %v1387, %v1373
    %v1389 = vadd.f32 %v1388, %v1374
    %v1390 = vadd.f32 %v1389, %v1375
    %v1391 = vadd.f32 %v1390, %v1376
    %v1392 = vadd.f32 %v1391, %v1377
    %v1393 = vadd.f32 %v1392, %v1378
    %v1394 = vadd.f32 %v1393, %v1379
    %v1395 = vadd.f32 %v1394, %v1380
    %v1396 = vadd.f32 %v1395, %v1381
    %v1397 = vadd.f32 %v1396, %v1382
    %v1398 = vrot.slane %v1397, 4
    %v1399 = vadd.f32 %v1397, %v1398
    %v1400 = vrot.slane %v1399, 2
    %v1401 = vadd.f32 %v1399, %v1400
    %v1402 = vrot.slane %v1401, 1
    %v1403 = vadd.f32 %v1401, %v1402
    %vm1404 = vcmask 1040384
    %v1405 = vsel %vm1404, %v1366, %v1403
    %v1406 = vld [vmem:[%s134] sm:$0x3]
    %v1407 = vadd.f32 %v1406, %v1405
    %1408 = vst [vmem:[%s134] sm:$0x3] %v1407
  $region33: #{hamming_refinement_loss.1} parent=0 // pred_fallthru
    _
  %s1409 = sadd.s32 0, 0
  %s1410 = sld [smem:[#allocation3 + %s1409]]
  %p1411 = scmp.lt.s32.totalorder %s1410, 0
  %s1412 = scalar_select %p1411, %s1410, 0
  %s1413 = smul.addr %s1412, 2
  %s1414 = scalar_lea.vmem %s7, %s1413
  // Predicated region
  $region34: #{hamming_refinement_loss.1} parent=0 // pred_check
    _
  $region35: #{hamming_refinement_loss.1} parent=0 // pred_check_branch
    %1416 = sbr.rel (0) target = $region37
  $region36: #{hamming_refinement_loss.1} parent=0 // pred_region
    %s1417 = sadd.s32 0, 0
    %s1418 = sld [smem:[#allocation3 + %s1417]]
  $region37: #{hamming_refinement_loss.1} parent=0 // pred_fallthru
    _
  // Predicated region
  $region38: #{hamming_refinement_loss.1} parent=0 // pred_check
    _
  $region39: #{hamming_refinement_loss.1} parent=0 // pred_check_branch
    %1420 = sbr.rel (0) target = $region41
  $region40: #{hamming_refinement_loss.1} parent=0 // pred_region
    %s1421 = sadd.s32 0, 0
    %s1422 = sld [smem:[#allocation3 + %s1421]]
    %p1423 = scmp.lt.s32.totalorder %s1422, 0
    %s1424 = scalar_select %p1423, %s1422, 0
    %s1425 = smul.addr %s1424, 2
    %s1426 = scalar_lea.vmem %s7, %s1425
  $region41: #{hamming_refinement_loss.1} parent=0 // pred_fallthru
    _

</llo_original>
